<compile_context>
chip_gen: v7x
topology: tpu7x:2x2x1
jax: 0.10.0
libtpu: 0.0.40
codegen_flags: <defaults>
</compile_context>

<pallas_src>
import numpy as np
import jax
import jax.numpy as jnp
from jax.experimental import pallas as pl
from jax.experimental.pallas import tpu as pltpu


_SQRT_2_OVER_PI = 0.7978845608028654
_GELU_C = 0.044715


def _mlp_kernel(x_ref, w1_ref, b1_ref, w2_ref, b2_ref, o_ref):
    # x_ref : (tm, D)   f32  token tile (cast to bf16 in-kernel)
    # w1_ref: (D, th)   bf16 fc1 weight chunk (already transposed to (in, out))
    # b1_ref: (1, th)   f32  fc1 bias chunk
    # w2_ref: (th, D)   bf16 fc2 weight chunk
    # b2_ref: (1, D)    f32  fc2 bias
    # o_ref : (tm, D)   f32  output tile; doubles as the fc2 accumulator since
    #                        its block index (i, 0) is constant across j.
    j = pl.program_id(1)

    @pl.when(j == 0)
    def _():
        o_ref[...] = jnp.zeros_like(o_ref)

    # fc1 chunk: (tm, D) @ (D, th) -> f32 (tm, th) on the MXU
    x = x_ref[...].astype(jnp.bfloat16)
    h = jnp.dot(x, w1_ref[...], preferred_element_type=jnp.float32)
    h = h + b1_ref[...]

    # GELU (tanh approximation), f32 on VPU/EUP
    u = _SQRT_2_OVER_PI * (h + _GELU_C * h * h * h)
    h = 0.5 * h * (1.0 + jnp.tanh(u))

    # fc2 partial product accumulated straight into the resident output tile.
    o_ref[...] += jnp.dot(h.astype(w2_ref.dtype), w2_ref[...],
                          preferred_element_type=jnp.float32)

    @pl.when(j == pl.num_programs(1) - 1)
    def _():
        o_ref[...] += b2_ref[...]


def prepare_mlp_params(fc1_w, fc1_b, fc2_w, fc2_b):
    """One-time (init-time) weight prep.  PyTorch Linear layout is (out, in);
    transpose to (in, out) and cast the matmul operands to bf16 here so these
    HBM passes are not paid on every forward call."""
    w1t = jnp.transpose(fc1_w).astype(jnp.bfloat16)   # (D, Hd)
    w2t = jnp.transpose(fc2_w).astype(jnp.bfloat16)   # (Hd, D)
    b1r = fc1_b.reshape(1, -1).astype(jnp.float32)    # (1, Hd)
    b2r = fc2_b.reshape(1, -1).astype(jnp.float32)    # (1, D)
    return w1t, b1r, w2t, b2r


def _footprint_bytes(tm, th, D):
    # Double-buffered pipeline buffers: f32 x tile + f32 out tile,
    # bf16 W1/W2 chunks, f32 bias rows.
    return 2 * (2 * tm * D * 4 + 2 * D * th * 2 + th * 4 + D * 4)


def _choose_tiles(M, D, Hd, vmem_budget_bytes):
    """Pick (tm, th).  Priorities: (1) keep W1/W2 fully VMEM-resident across
    token tiles (th == Hd) when they fit the budget, (2) the biggest token
    tile that fits, (3) keep >= 2 token tiles so v7x's two TensorCores both
    get work on the 'parallel' axis."""
    th_opts = list(dict.fromkeys(
        t for t in (Hd, 512, 256, 128) if t <= Hd and Hd % t == 0))
    tm_opts = [t for t in (512, 256, 128, 64, 32, 16, 8) if t <= M and M % t == 0]
    if not th_opts:
        th_opts = [Hd]
    if not tm_opts:
        tm_opts = [M]

    for th in th_opts:
        for tm in tm_opts:
            if _footprint_bytes(tm, th, D) <= vmem_budget_bytes:
                while (M // tm < 2 and tm >= 16 and tm % 2 == 0
                       and M % (tm // 2) == 0):
                    tm //= 2
                return tm, th
    return tm_opts[-1], th_opts[-1]


def mlp_pallas(x, params, *, tm=None, th=None, vmem_budget_bytes=48 << 20):
    """x: (B, S, D) float32.  params: output of prepare_mlp_params."""
    w1t, b1r, w2t, b2r = params
    B, S, D = x.shape
    Hd = w1t.shape[1]
    M = B * S

    if tm is None or th is None:
        atm, ath = _choose_tiles(M, D, Hd, vmem_budget_bytes)
        tm = atm if tm is None else tm
        th = ath if th is None else th
    assert M % tm == 0 and Hd % th == 0, "token / hidden dims must tile evenly"
    # TODO(synk): no padding path for ragged M / mlp_dim; shapes must tile evenly.

    x2 = x.reshape(M, D)   # no wrapper-side bf16 cast; done on the VPU in-kernel

    # Explicit scoped-VMEM limit: enough for the chosen tiles + headroom,
    # never above v7x's 64 MiB physical VMEM.
    vmem_limit = min(max(_footprint_bytes(tm, th, D) + (8 << 20), 32 << 20),
                     64 << 20)

    out = pl.pallas_call(
        _mlp_kernel,
        out_shape=jax.ShapeDtypeStruct((M, D), jnp.float32),
        grid_spec=pltpu.PrefetchScalarGridSpec(
            num_scalar_prefetch=0,
            grid=(M // tm, Hd // th),   # (token tiles [parallel], hidden tiles [arbitrary])
            in_specs=[
                pl.BlockSpec((tm, D), lambda i, j: (i, 0)),   # x tile (f32)
                pl.BlockSpec((D, th), lambda i, j: (0, j)),   # fc1 weight chunk
                pl.BlockSpec((1, th), lambda i, j: (0, j)),   # fc1 bias chunk
                pl.BlockSpec((th, D), lambda i, j: (j, 0)),   # fc2 weight chunk
                pl.BlockSpec((1, D), lambda i, j: (0, 0)),    # fc2 bias
            ],
            out_specs=pl.BlockSpec((tm, D), lambda i, j: (i, 0)),
        ),
        compiler_params=pltpu.CompilerParams(
            dimension_semantics=("parallel", "arbitrary"),
            vmem_limit_bytes=vmem_limit),
    )(x2, w1t, b1r, w2t, b2r)

    return out.reshape(B, S, D)


def _reference(x, fc1_w, fc1_b, fc2_w, fc2_b):
    """Pure-JAX reference mirroring the kernel's bf16 MXU-operand casts."""
    xb = x.astype(jnp.bfloat16).astype(jnp.float32)
    w1b = fc1_w.astype(jnp.bfloat16).astype(jnp.float32)
    w2b = fc2_w.astype(jnp.bfloat16).astype(jnp.float32)
    h = jnp.einsum('bsd,hd->bsh', xb, w1b) + fc1_b
    h = jax.nn.gelu(h, approximate=True)
    h = h.astype(jnp.bfloat16).astype(jnp.float32)
    y = jnp.einsum('bsh,dh->bsd', h, w2b) + fc2_b
    return y   # dropout (p=0.1) is identity at inference


if __name__ == "__main__":
    # Small but lane-dense shapes consistent with a transformer MLP block.
    B, S, D, Hd = 2, 128, 256, 512

    key = jax.random.PRNGKey(0)
    kx, k1, k2, k3, k4 = jax.random.split(key, 5)

    x = jax.random.normal(kx, (B, S, D), jnp.float32)

    # Mimic the module's init: xavier_uniform weights, normal(std=1e-6) biases.
    a1 = float(np.sqrt(6.0 / (D + Hd)))
    fc1_w = jax.random.uniform(k1, (Hd, D), jnp.float32, -a1, a1)
    fc1_b = jax.random.normal(k2, (Hd,), jnp.float32) * 1e-6
    a2 = float(np.sqrt(6.0 / (Hd + D)))
    fc2_w = jax.random.uniform(k3, (D, Hd), jnp.float32, -a2, a2)
    fc2_b = jax.random.normal(k4, (D,), jnp.float32) * 1e-6

    params = prepare_mlp_params(fc1_w, fc1_b, fc2_w, fc2_b)  # init-time, cached
    out = mlp_pallas(x, params)
    out = jax.block_until_ready(out)

    ref = _reference(x, fc1_w, fc1_b, fc2_w, fc2_b)
    assert np.allclose(np.asarray(out), np.asarray(ref), atol=2e-2, rtol=2e-2), \
        "mismatch vs JAX reference"

    print("KERNEL_OK")
</pallas_src>

<mosaic_0001>
module attributes {stable_mosaic.version = 11 : i64} {
  func.func @_mlp_kernel(%arg0: i32, %arg1: i32, %arg2: memref<128x256xf32, #tpu.memory_space<vmem>>, %arg3: memref<256x512xbf16, #tpu.memory_space<vmem>>, %arg4: memref<1x512xf32, #tpu.memory_space<vmem>>, %arg5: memref<512x256xbf16, #tpu.memory_space<vmem>>, %arg6: memref<1x256xf32, #tpu.memory_space<vmem>>, %arg7: memref<128x256xf32, #tpu.memory_space<vmem>>) attributes {dimension_semantics = [#tpu.dimension_semantics<parallel>, #tpu.dimension_semantics<arbitrary>], iteration_bounds = array<i64: 2, 1>, scalar_prefetch = 0 : i64, scratch_operands = 0 : i64, tpu.core_type = #tpu.core_type<tc>, window_params = [{transform_indices = @transform_0, window_bounds = array<i64: 128, 256>}, {transform_indices = @transform_1, window_bounds = array<i64: 256, 512>}, {transform_indices = @transform_2, window_bounds = array<i64: 1, 512>}, {transform_indices = @transform_3, window_bounds = array<i64: 512, 256>}, {pipeline_mode = #tpu.pipeline_mode<synchronous>, transform_indices = @transform_4, window_bounds = array<i64: 1, 256>}, {transform_indices = @transform_5, window_bounds = array<i64: 128, 256>}]} {
    %c0_i32 = arith.constant 0 : i32
    %0 = arith.cmpi eq, %arg1, %c0_i32 : i32
    %1 = arith.extui %0 : i1 to i32
    %c0_i32_0 = arith.constant 0 : i32
    %2 = arith.cmpi ne, %1, %c0_i32_0 : i32
    scf.if %2 {
      %cst_19 = arith.constant 0.000000e+00 : f32
      %32 = vector.broadcast %cst_19 : f32 to vector<128x256xf32>
      %c0_20 = arith.constant 0 : index
      %c0_21 = arith.constant 0 : index
      %33 = vector.load %arg7[%c0_20, %c0_21] : memref<128x256xf32, #tpu.memory_space<vmem>>, vector<128x256xf32>
      tpu.vector_store %arg7[%c0_20, %c0_21], %32 {strides = array<i32>} : memref<128x256xf32, #tpu.memory_space<vmem>>, vector<128x256xf32>,
    } else {
    }
    %c0 = arith.constant 0 : index
    %c0_1 = arith.constant 0 : index
    %3 = vector.load %arg2[%c0, %c0_1] : memref<128x256xf32, #tpu.memory_space<vmem>>, vector<128x256xf32>
    %4 = arith.truncf %3 : vector<128x256xf32> to vector<128x256xbf16>
    %c0_2 = arith.constant 0 : index
    %c0_3 = arith.constant 0 : index
    %5 = vector.load %arg3[%c0_2, %c0_3] : memref<256x512xbf16, #tpu.memory_space<vmem>>, vector<256x512xbf16>
    %cst = arith.constant dense<0.000000e+00> : vector<128x512xf32>
    %6 = tpu.matmul %4, %5, %cst {dimension_numbers = #tpu.dot_dimension_numbers<[1], [0], [0], [1], [0, 0, 1, 1], [], []>} : vector<128x256xbf16>, vector<256x512xbf16>, vector<128x512xf32> -> vector<128x512xf32>
    %c0_4 = arith.constant 0 : index
    %c0_5 = arith.constant 0 : index
    %7 = vector.load %arg4[%c0_4, %c0_5] : memref<1x512xf32, #tpu.memory_space<vmem>>, vector<1x512xf32>
    %8 = vector.broadcast %7 : vector<1x512xf32> to vector<128x512xf32>
    %9 = arith.addf %6, %8 : vector<128x512xf32>
    %cst_6 = arith.constant 4.471500e-02 : f32
    %10 = vector.broadcast %cst_6 : f32 to vector<128x512xf32>
    %11 = arith.mulf %10, %9 : vector<128x512xf32>
    %12 = arith.mulf %11, %9 : vector<128x512xf32>
    %13 = arith.mulf %12, %9 : vector<128x512xf32>
    %14 = arith.addf %9, %13 : vector<128x512xf32>
    %cst_7 = arith.constant 0.797884583 : f32
    %15 = vector.broadcast %cst_7 : f32 to vector<128x512xf32>
    %16 = arith.mulf %15, %14 : vector<128x512xf32>
    %cst_8 = arith.constant 5.000000e-01 : f32
    %17 = vector.broadcast %cst_8 : f32 to vector<128x512xf32>
    %18 = arith.mulf %17, %9 : vector<128x512xf32>
    %19 = math.tanh %16 : vector<128x512xf32>
    %cst_9 = arith.constant 1.000000e+00 : f32
    %20 = vector.broadcast %cst_9 : f32 to vector<128x512xf32>
    %21 = arith.addf %20, %19 : vector<128x512xf32>
    %22 = arith.mulf %18, %21 : vector<128x512xf32>
    %c0_10 = arith.constant 0 : index
    %c0_11 = arith.constant 0 : index
    %23 = vector.load %arg7[%c0_10, %c0_11] : memref<128x256xf32, #tpu.memory_space<vmem>>, vector<128x256xf32>
    %24 = arith.truncf %22 : vector<128x512xf32> to vector<128x512xbf16>
    %c0_12 = arith.constant 0 : index
    %c0_13 = arith.constant 0 : index
    %25 = vector.load %arg5[%c0_12, %c0_13] : memref<512x256xbf16, #tpu.memory_space<vmem>>, vector<512x256xbf16>
    %cst_14 = arith.constant dense<0.000000e+00> : vector<128x256xf32>
    %26 = tpu.matmul %24, %25, %cst_14 {dimension_numbers = #tpu.dot_dimension_numbers<[1], [0], [0], [1], [0, 0, 1, 1], [], []>} : vector<128x512xbf16>, vector<512x256xbf16>, vector<128x256xf32> -> vector<128x256xf32>
    %27 = arith.addf %23, %26 : vector<128x256xf32>
    %c0_15 = arith.constant 0 : index
    %c0_16 = arith.constant 0 : index
    %28 = vector.load %arg7[%c0_15, %c0_16] : memref<128x256xf32, #tpu.memory_space<vmem>>, vector<128x256xf32>
    tpu.vector_store %arg7[%c0_15, %c0_16], %27 {strides = array<i32>} : memref<128x256xf32, #tpu.memory_space<vmem>>, vector<128x256xf32>,
    %c0_i32_17 = arith.constant 0 : i32
    %29 = arith.cmpi eq, %arg1, %c0_i32_17 : i32
    %30 = arith.extui %29 : i1 to i32
    %c0_i32_18 = arith.constant 0 : i32
    %31 = arith.cmpi ne, %30, %c0_i32_18 : i32
    scf.if %31 {
      %c0_19 = arith.constant 0 : index
      %c0_20 = arith.constant 0 : index
      %32 = vector.load %arg7[%c0_19, %c0_20] : memref<128x256xf32, #tpu.memory_space<vmem>>, vector<128x256xf32>
      %c0_21 = arith.constant 0 : index
      %c0_22 = arith.constant 0 : index
      %33 = vector.load %arg6[%c0_21, %c0_22] : memref<1x256xf32, #tpu.memory_space<vmem>>, vector<1x256xf32>
      %34 = vector.broadcast %33 : vector<1x256xf32> to vector<128x256xf32>
      %35 = arith.addf %32, %34 : vector<128x256xf32>
      %c0_23 = arith.constant 0 : index
      %c0_24 = arith.constant 0 : index
      %36 = vector.load %arg7[%c0_23, %c0_24] : memref<128x256xf32, #tpu.memory_space<vmem>>, vector<128x256xf32>
      tpu.vector_store %arg7[%c0_23, %c0_24], %35 {strides = array<i32>} : memref<128x256xf32, #tpu.memory_space<vmem>>, vector<128x256xf32>,
    } else {
    }
    return
  }
  func.func @transform_0(%arg0: i32, %arg1: i32) -> (i32, i32) {
    %c0_i32 = arith.constant 0 : i32
    %c0_i32_0 = arith.constant 0 : i32
    return %arg0, %c0_i32 : i32, i32
  }
  func.func @transform_1(%arg0: i32, %arg1: i32) -> (i32, i32) {
    %c0_i32 = arith.constant 0 : i32
    %c0_i32_0 = arith.constant 0 : i32
    return %c0_i32, %arg1 : i32, i32
  }
  func.func @transform_2(%arg0: i32, %arg1: i32) -> (i32, i32) {
    %c0_i32 = arith.constant 0 : i32
    %c0_i32_0 = arith.constant 0 : i32
    return %c0_i32, %arg1 : i32, i32
  }
  func.func @transform_3(%arg0: i32, %arg1: i32) -> (i32, i32) {
    %c0_i32 = arith.constant 0 : i32
    %c0_i32_0 = arith.constant 0 : i32
    return %arg1, %c0_i32 : i32, i32
  }
  func.func @transform_4(%arg0: i32, %arg1: i32) -> (i32, i32) {
    %c0_i32 = arith.constant 0 : i32
    %c0_i32_0 = arith.constant 0 : i32
    %c0_i32_1 = arith.constant 0 : i32
    return %c0_i32, %c0_i32_0 : i32, i32
  }
  func.func @transform_5(%arg0: i32, %arg1: i32) -> (i32, i32) {
    %c0_i32 = arith.constant 0 : i32
    %c0_i32_0 = arith.constant 0 : i32
    return %arg0, %c0_i32 : i32, i32
  }
}

</mosaic_0001>

<llo_original>
// kernel: tpu_custom_call.1
$region0: #{tpu_custom_call.1}
  #allocation0 [shape = 'u32[]', space=smem, size = 0x4, offset = 0x4, fixed_abs, tag = 'smem constant byte address 0x4 - core index']
  #allocation1 [shape = 'u32[144,128]{1,0:T(1,128)}', space=vmem, size = 0x12000, scoped, tag = 'internal scratch']
  %s0 = inlined_call_operand.hbm [shape: f32[256,256], index: 0, kind: input, shape index: {}]
  %s1 = inlined_call_operand.hbm [shape: bf16[256,512], index: 1, kind: input, shape index: {}]
  %s2 = inlined_call_operand.vmem [shape: f32[1,512], index: 2, kind: input, shape index: {}]
  %s3 = inlined_call_operand.hbm [shape: bf16[512,256], index: 3, kind: input, shape index: {}]
  %s4 = inlined_call_operand.vmem [shape: f32[1,256], index: 4, kind: input, shape index: {}]
  %s5 = inlined_call_operand.hbm [shape: f32[256,256], index: 5, kind: output, shape index: {}]
  %s6 = sld [smem:[#allocation0]]
  $region73: #{tpu_custom_call.1} parent=0
    _
  %s8 = ssub.s32 1, %s6
  %s9 = scalar_select 0, %s8, %s6
  $region1: #{tpu_custom_call.1} parent=0
    #allocation2 [shape = 'u8[262144]{0}', space=vmem, size = 0x40000, scoped, tag = 'input window, operand 0']
    #allocation3 [shape = 's32[2]{0}', space=sflag, size = 0x8, scoped, tag = 'scoped memory for tpu_custom_call.1']
    #allocation4 [shape = 's32[2]{0}', space=sflag, size = 0x8, scoped, tag = 'scoped memory for tpu_custom_call.1']
    #allocation5 [shape = 'u8[262144]{0}', space=vmem, size = 0x40000, scoped, tag = 'input window, operand 1, single buffered']
    #allocation6 [shape = 's32[1]{0}', space=sflag, size = 0x4, scoped, tag = 'scoped memory for tpu_custom_call.1']
    #allocation7 [shape = 'u8[262144]{0}', space=vmem, size = 0x40000, scoped, tag = 'input window, operand 3, single buffered']
    #allocation8 [shape = 'u8[262144]{0}', space=vmem, size = 0x40000, scoped, tag = 'output window, operand 0']
    %10 = vsyncpa [#allocation3], 0
    %s11 = scalar_lea.sflag [#allocation3], 1
    %12 = vsyncpa %s11, 0
    %13 = vsyncpa [#allocation6], 0
    %14 = vsyncpa [#allocation4], 0
    %s15 = scalar_lea.sflag [#allocation4], 1
    %16 = vsyncpa %s15, 0
    loop: start=0, step=1, limit=4
    $region2: #{tpu_custom_call.1} parent=1 // loop_pre_header
      _
    $region3: #{tpu_custom_call.1} parent=1 // loop_header
      %s18 = sphi 0, %s22
      %p19 = scmp.ge.s32.totalorder %s18, 4
      %s25 = sphi 0, %s37
      %s26 = sphi 0, %s33
      %s27 = sphi 0, %s25
      %s28 = sphi 0, %s26
      %s29 = sphi 0, %s27
      %s30 = sphi 0, %s28
      %s40 = sphi 0, %s42
      %s43 = sphi 0, %s40
      %s44 = sphi 0, %s43
      %s60 = sphi 0, %s44
      %s66 = sphi 0, %s68
      %s69 = sphi 0, %s66
      %s70 = sphi 0, %s69
      %s86 = sphi 0, %s70
      %s92 = sphi 0, %s94
      %s95 = sphi 0, %s92
      %s96 = sphi 0, %s95
      %s112 = sphi 0, %s96
      %s118 = sphi 0, %s120
      %s121 = sphi 0, %s118
      %s122 = sphi 0, %s121
      %s138 = sphi 0, %s122
      %s142 = sphi 0, %s142
      %s144 = sphi 0, %s142
      %s145 = sphi 0, %s144
      %s159 = sphi 0, %s145
      %s165 = sphi 0, %s167
      %s168 = sphi 0, %s165
      %s169 = sphi 0, %s168
      %s185 = sphi 0, %s169
    $region4: #{tpu_custom_call.1} parent=1 // loop_header_branch
      %21 = sbr.rel (%p19) target = $region8
    $region5: #{tpu_custom_call.1} parent=1 // loop_body
      %s23 = ssub.s32 %s18, 1
      %s24 = ssub.s32 %s18, 2
      %s31 = sadd.s32 1, %s26
      %p32 = scmp.ge.s32.totalorder %s31, 1
      %s33 = scalar_select %p32, 0, %s31
      %s34 = sadd.s32 1, %s25
      %s35 = scalar_select %p32, %s34, %s25
      %p36 = scmp.ge.s32.totalorder %s35, 2
      %s37 = scalar_select %p36, 0, %s35
      %s38 = ssub.s32 %s25, %s37
      %p39 = scmp.eq.s32.totalorder %s38, 0
      %s41 = sadd.s32 %s40, 1
      %s42 = scalar_select %p39, %s40, %s41
      %p45 = pneg %p39
      %p46 = scmp.eq.s32.totalorder %s18, 1
      %p47 = por %p45, %p46
      %p48 = scmp.ne.s32.totalorder %s40, %s43
      %p49 = scmp.eq.s32.totalorder %s18, 0
      %p50 = por %p48, %p49
      %p51 = scmp.ne.s32.totalorder %s40, %s43
      %p52 = scmp.eq.s32.totalorder %s23, 1
      %p53 = por %p51, %p52
      %p54 = scmp.ne.s32.totalorder %s43, %s44
      %p55 = scmp.eq.s32.totalorder %s23, 0
      %p56 = por %p54, %p55
      %p57 = scmp.ne.s32.totalorder %s43, %s44
      %p58 = scmp.eq.s32.totalorder %s24, 1
      %p59 = por %p57, %p58
      %p61 = scmp.ne.s32.totalorder %s44, %s60
      %p62 = scmp.eq.s32.totalorder %s24, 0
      %p63 = por %p61, %p62
      %s64 = ssub.s32 %s26, %s33
      %p65 = scmp.eq.s32.totalorder %s64, 0
      %s67 = sadd.s32 %s66, 1
      %s68 = scalar_select %p65, %s66, %s67
      %p71 = pneg %p65
      %p72 = scmp.eq.s32.totalorder %s18, 1
      %p73 = por %p71, %p72
      %p74 = scmp.ne.s32.totalorder %s66, %s69
      %p75 = scmp.eq.s32.totalorder %s18, 0
      %p76 = por %p74, %p75
      %p77 = scmp.ne.s32.totalorder %s66, %s69
      %p78 = scmp.eq.s32.totalorder %s23, 1
      %p79 = por %p77, %p78
      %p80 = scmp.ne.s32.totalorder %s69, %s70
      %p81 = scmp.eq.s32.totalorder %s23, 0
      %p82 = por %p80, %p81
      %p83 = scmp.ne.s32.totalorder %s69, %s70
      %p84 = scmp.eq.s32.totalorder %s24, 1
      %p85 = por %p83, %p84
      %p87 = scmp.ne.s32.totalorder %s70, %s86
      %p88 = scmp.eq.s32.totalorder %s24, 0
      %p89 = por %p87, %p88
      %s90 = ssub.s32 %s26, %s33
      %p91 = scmp.eq.s32.totalorder %s90, 0
      %s93 = sadd.s32 %s92, 1
      %s94 = scalar_select %p91, %s92, %s93
      %p97 = pneg %p91
      %p98 = scmp.eq.s32.totalorder %s18, 1
      %p99 = por %p97, %p98
      %p100 = scmp.ne.s32.totalorder %s92, %s95
      %p101 = scmp.eq.s32.totalorder %s18, 0
      %p102 = por %p100, %p101
      %p103 = scmp.ne.s32.totalorder %s92, %s95
      %p104 = scmp.eq.s32.totalorder %s23, 1
      %p105 = por %p103, %p104
      %p106 = scmp.ne.s32.totalorder %s95, %s96
      %p107 = scmp.eq.s32.totalorder %s23, 0
      %p108 = por %p106, %p107
      %p109 = scmp.ne.s32.totalorder %s95, %s96
      %p110 = scmp.eq.s32.totalorder %s24, 1
      %p111 = por %p109, %p110
      %p113 = scmp.ne.s32.totalorder %s96, %s112
      %p114 = scmp.eq.s32.totalorder %s24, 0
      %p115 = por %p113, %p114
      %s116 = ssub.s32 %s26, %s33
      %p117 = scmp.eq.s32.totalorder %s116, 0
      %s119 = sadd.s32 %s118, 1
      %s120 = scalar_select %p117, %s118, %s119
      %p123 = pneg %p117
      %p124 = scmp.eq.s32.totalorder %s18, 1
      %p125 = por %p123, %p124
      %p126 = scmp.ne.s32.totalorder %s118, %s121
      %p127 = scmp.eq.s32.totalorder %s18, 0
      %p128 = por %p126, %p127
      %p129 = scmp.ne.s32.totalorder %s118, %s121
      %p130 = scmp.eq.s32.totalorder %s23, 1
      %p131 = por %p129, %p130
      %p132 = scmp.ne.s32.totalorder %s121, %s122
      %p133 = scmp.eq.s32.totalorder %s23, 0
      %p134 = por %p132, %p133
      %p135 = scmp.ne.s32.totalorder %s121, %s122
      %p136 = scmp.eq.s32.totalorder %s24, 1
      %p137 = por %p135, %p136
      %p139 = scmp.ne.s32.totalorder %s122, %s138
      %p140 = scmp.eq.s32.totalorder %s24, 0
      %p141 = por %p139, %p140
      %s143 = sadd.s32 %s142, 1
      %p146 = scmp.eq.s32.totalorder %s18, 1
      %p147 = scmp.ne.s32.totalorder %s142, %s144
      %p148 = scmp.eq.s32.totalorder %s18, 0
      %p149 = por %p147, %p148
      %p150 = scmp.ne.s32.totalorder %s142, %s144
      %p151 = scmp.eq.s32.totalorder %s23, 1
      %p152 = por %p150, %p151
      %p153 = scmp.ne.s32.totalorder %s144, %s145
      %p154 = scmp.eq.s32.totalorder %s23, 0
      %p155 = por %p153, %p154
      %p156 = scmp.ne.s32.totalorder %s144, %s145
      %p157 = scmp.eq.s32.totalorder %s24, 1
      %p158 = por %p156, %p157
      %p160 = scmp.ne.s32.totalorder %s145, %s159
      %p161 = scmp.eq.s32.totalorder %s24, 0
      %p162 = por %p160, %p161
      %s163 = ssub.s32 %s25, %s37
      %p164 = scmp.eq.s32.totalorder %s163, 0
      %s166 = sadd.s32 %s165, 1
      %s167 = scalar_select %p164, %s165, %s166
      %p170 = pneg %p164
      %p171 = scmp.eq.s32.totalorder %s18, 1
      %p172 = por %p170, %p171
      %p173 = scmp.ne.s32.totalorder %s165, %s168
      %p174 = scmp.eq.s32.totalorder %s18, 0
      %p175 = por %p173, %p174
      %p176 = scmp.ne.s32.totalorder %s165, %s168
      %p177 = scmp.eq.s32.totalorder %s23, 1
      %p178 = por %p176, %p177
      %p179 = scmp.ne.s32.totalorder %s168, %s169
      %p180 = scmp.eq.s32.totalorder %s23, 0
      %p181 = por %p179, %p180
      %p182 = scmp.ne.s32.totalorder %s168, %s169
      %p183 = scmp.eq.s32.totalorder %s24, 1
      %p184 = por %p182, %p183
      %p186 = scmp.ne.s32.totalorder %s169, %s185
      %p187 = scmp.eq.s32.totalorder %s24, 0
      %p188 = por %p186, %p187
      %p189 = scmp.le.s32.totalorder 1, %s18
      %p190 = scmp.lt.s32.totalorder %s18, 3
      %p191 = pnand %p189, %p190
      %p192 = pneg %p191
      // Predicated region
      $region9: #{tpu_custom_call.1} parent=5 // pred_check
        _
      $region10: #{tpu_custom_call.1} parent=5 // pred_check_branch
        %194 = sbr.rel (%p191) target = $region12
      $region11: #{tpu_custom_call.1} parent=5 // pred_region
        %s195 = ssub.s32 %s18, 1
        // Predicated region
        $region13: #{tpu_custom_call.1} parent=11 // pred_check
          %p196 = pneg %p82
        $region14: #{tpu_custom_call.1} parent=11 // pred_check_branch
          %198 = sbr.rel (%p196) target = $region16
        $region15: #{tpu_custom_call.1} parent=11 // pred_region
          %s199 = smul.u32 4, %s28
          %s201 = ssub.s32 8192, 8192
          %202 = vsyncadd [#allocation6], %s201
          %s203 = smul.addr %s199, 64
          %s204 = scalar_lea.hbm %s1, %s203
          %s205 = sshll.u32 [#allocation5], 4
          %s206 = int_to_ptr.vmem [resolvable:$true] %s205
          %211 = dma.hbm_to_vmem [thread:$0]  %s204, 8192, %s206, [#allocation6], 256, 256, 16
        $region16: #{tpu_custom_call.1} parent=11 // pred_fallthru
          _
        // Predicated region
        $region17: #{tpu_custom_call.1} parent=11 // pred_check
          %p212 = pneg %p108
        $region18: #{tpu_custom_call.1} parent=11 // pred_check_branch
          %214 = sbr.rel (%p212) target = $region20
        $region19: #{tpu_custom_call.1} parent=11 // pred_region
          %s215 = smul.u32 4, %s28
          %p216 = scmp.lt.s32.totalorder %s215, 3
          %s217 = scalar_select %p216, %s215, 3
          %s218 = scalar_lea.vmem %s2, %s217
          %s219 = smul.u32 4, %s28
        $region20: #{tpu_custom_call.1} parent=11 // pred_fallthru
          _
        // Predicated region
        $region21: #{tpu_custom_call.1} parent=11 // pred_check
          %p220 = pneg %p134
        $region22: #{tpu_custom_call.1} parent=11 // pred_check_branch
          %222 = sbr.rel (%p220) target = $region24
        $region23: #{tpu_custom_call.1} parent=11 // pred_region
          %s223 = smul.u32 64, %s28
          %s225 = ssub.s32 8192, 8192
          %226 = vsyncadd [#allocation6], %s225
          %s227 = smul.addr %s223, 2
          %s228 = smul.addr %s227, 64
          %s229 = scalar_lea.hbm %s3, %s228
          %s230 = sshll.u32 [#allocation7], 4
          %s231 = int_to_ptr.vmem [resolvable:$true] %s230
          %236 = dma.hbm_to_vmem [thread:$0]  %s229, 8192, %s231, [#allocation6], 128, 128, 8
        $region24: #{tpu_custom_call.1} parent=11 // pred_fallthru
          _
        // Predicated region
        $region25: #{tpu_custom_call.1} parent=11 // pred_check
          %p237 = pneg %p155
        $region26: #{tpu_custom_call.1} parent=11 // pred_check_branch
          %239 = sbr.rel (%p237) target = $region28
        $region27: #{tpu_custom_call.1} parent=11 // pred_region
          _
        $region28: #{tpu_custom_call.1} parent=11 // pred_fallthru
          _
      $region12: #{tpu_custom_call.1} parent=5 // pred_fallthru
        _
      %p240 = scmp.lt.s32.totalorder %s18, 2
      // Predicated region
      $region29: #{tpu_custom_call.1} parent=5 // pred_check
        %p241 = pneg %p240
      $region30: #{tpu_custom_call.1} parent=5 // pred_check_branch
        %243 = sbr.rel (%p241) target = $region32
      $region31: #{tpu_custom_call.1} parent=5 // pred_region
        // Predicated region
        $region33: #{tpu_custom_call.1} parent=31 // pred_check
          %p244 = pneg %p50
        $region34: #{tpu_custom_call.1} parent=31 // pred_check_branch
          %246 = sbr.rel (%p244) target = $region36
        $region35: #{tpu_custom_call.1} parent=31 // pred_region
          %s247 = sand.u32 %s40, 1
          %s248 = scalar_lea.sflag [#allocation3], %s247
          %s249 = sand.u32 %s40, 1
          %s250 = smul.addr %s249, 256
          %s251 = scalar_lea.vmem [#allocation2], %s250
          %s252 = smul.u32 16, %s25
          %s254 = ssub.s32 4096, 4096
          %255 = vsyncadd %s248, %s254
          %s256 = smul.addr %s252, 2
          %s257 = smul.addr %s256, 128
          %s258 = scalar_lea.hbm %s0, %s257
          %s259 = sshll.u32 %s251, 4
          %s260 = int_to_ptr.vmem [resolvable:$true] %s259
          %265 = dma.hbm_to_vmem [thread:$0]  %s258, 4096, %s260, %s248, 256, 256, 16
        $region36: #{tpu_custom_call.1} parent=31 // pred_fallthru
          _
      $region32: #{tpu_custom_call.1} parent=5 // pred_fallthru
        _
      %p266 = scmp.le.s32.totalorder 1, %s18
      %p267 = scmp.lt.s32.totalorder %s18, 3
      %p268 = pnand %p266, %p267
      %p269 = pneg %p268
      // Predicated region
      $region37: #{tpu_custom_call.1} parent=5 // pred_check
        _
      $region38: #{tpu_custom_call.1} parent=5 // pred_check_branch
        %271 = sbr.rel (%p268) target = $region40
      $region39: #{tpu_custom_call.1} parent=5 // pred_region
        %s272 = ssub.s32 %s18, 1
        %s273 = sand.u32 %s43, 1
        %s274 = scalar_lea.sflag [#allocation3], %s273
        %s275 = sand.u32 %s43, 1
        %s276 = smul.addr %s275, 256
        %s277 = scalar_lea.vmem [#allocation2], %s276
        // Predicated region
        $region41: #{tpu_custom_call.1} parent=39 // pred_check
          %p278 = pneg %p56
        $region42: #{tpu_custom_call.1} parent=39 // pred_check_branch
          %280 = sbr.rel (%p278) target = $region44
        $region43: #{tpu_custom_call.1} parent=39 // pred_region
          %281 = dma.done %s274, 4096
        $region44: #{tpu_custom_call.1} parent=39 // pred_fallthru
          _
        // Predicated region
        $region45: #{tpu_custom_call.1} parent=39 // pred_check
          %p282 = pneg %p82
        $region46: #{tpu_custom_call.1} parent=39 // pred_check_branch
          %284 = sbr.rel (%p282) target = $region48
        $region47: #{tpu_custom_call.1} parent=39 // pred_region
          %285 = dma.done [#allocation6], 8192
        $region48: #{tpu_custom_call.1} parent=39 // pred_fallthru
          _
        // Predicated region
        $region49: #{tpu_custom_call.1} parent=39 // pred_check
          %p286 = pneg %p134
        $region50: #{tpu_custom_call.1} parent=39 // pred_check_branch
          %288 = sbr.rel (%p286) target = $region52
        $region51: #{tpu_custom_call.1} parent=39 // pred_region
          %289 = dma.done [#allocation6], 8192
        $region52: #{tpu_custom_call.1} parent=39 // pred_fallthru
          _
        %s290 = sand.u32 %s43, 1
        %s291 = scalar_lea.sflag [#allocation3], %s290
        %s292 = sand.u32 %s43, 1
        %s293 = smul.addr %s292, 256
        %s294 = scalar_lea.vmem [#allocation2], %s293
        %p295 = pneg %p56
        %p296 = pneg %p53
        %p297 = pneg %p82
        %p298 = pneg %p79
        %s299 = smul.u32 4, %s28
        %p300 = scmp.lt.s32.totalorder %s299, 3
        %s301 = scalar_select %p300, %s299, 3
        %s302 = scalar_lea.vmem %s2, %s301
        %p303 = pneg %p108
        %p304 = pneg %p105
        %p305 = pneg %p134
        %p306 = pneg %p131
        %p307 = pneg %p155
        %p308 = pneg %p152
        %p309 = pneg %p181
        %p310 = pneg %p178
        %s311 = sand.u32 %s168, 1
        %s312 = scalar_lea.sflag [#allocation4], %s311
        %s313 = sand.u32 %s168, 1
        %s314 = smul.addr %s313, 256
        %s315 = scalar_lea.vmem [#allocation8], %s314
        %s316 = smul.u32 16, %s27
        %s317 = smul.u32 4, %s28
        %s318 = smul.u32 4, %s28
        %p319 = scmp.lt.s32.totalorder %s318, 3
        %s320 = scalar_select %p319, %s318, 3
        %s321 = scalar_lea.vmem %s2, %s320
        %s322 = smul.u32 4, %s28
        %s323 = smul.u32 64, %s28
        %s324 = smul.u32 16, %s27
        %p325 = scmp.eq.s32.totalorder %s28, 0
        // Predicated region
        $region53: #{tpu_custom_call.1} parent=39 // pred_check
          %p326 = pneg %p325
        $region54: #{tpu_custom_call.1} parent=39 // pred_check_branch
          %328 = sbr.rel (%p326) target = $region56
        $region55: #{tpu_custom_call.1} parent=39 // pred_region
          %329 = vst [vmem:[%s315] sm:$0xff] 0.0
          %330 = vst [vmem:[%s315 + $0x8] sm:$0xff] 0.0
          %331 = vst [vmem:[%s315 + $0x10] sm:$0xff] 0.0
          %332 = vst [vmem:[%s315 + $0x18] sm:$0xff] 0.0
          %333 = vst [vmem:[%s315 + $0x20] sm:$0xff] 0.0
          %334 = vst [vmem:[%s315 + $0x28] sm:$0xff] 0.0
          %335 = vst [vmem:[%s315 + $0x30] sm:$0xff] 0.0
          %336 = vst [vmem:[%s315 + $0x38] sm:$0xff] 0.0
          %337 = vst [vmem:[%s315 + $0x40] sm:$0xff] 0.0
          %338 = vst [vmem:[%s315 + $0x48] sm:$0xff] 0.0
          %339 = vst [vmem:[%s315 + $0x50] sm:$0xff] 0.0
          %340 = vst [vmem:[%s315 + $0x58] sm:$0xff] 0.0
          %341 = vst [vmem:[%s315 + $0x60] sm:$0xff] 0.0
          %342 = vst [vmem:[%s315 + $0x68] sm:$0xff] 0.0
          %343 = vst [vmem:[%s315 + $0x70] sm:$0xff] 0.0
          %344 = vst [vmem:[%s315 + $0x78] sm:$0xff] 0.0
          %345 = vst [vmem:[%s315 + $0x80] sm:$0xff] 0.0
          %346 = vst [vmem:[%s315 + $0x88] sm:$0xff] 0.0
          %347 = vst [vmem:[%s315 + $0x90] sm:$0xff] 0.0
          %348 = vst [vmem:[%s315 + $0x98] sm:$0xff] 0.0
          %349 = vst [vmem:[%s315 + $0xa0] sm:$0xff] 0.0
          %350 = vst [vmem:[%s315 + $0xa8] sm:$0xff] 0.0
          %351 = vst [vmem:[%s315 + $0xb0] sm:$0xff] 0.0
          %352 = vst [vmem:[%s315 + $0xb8] sm:$0xff] 0.0
          %353 = vst [vmem:[%s315 + $0xc0] sm:$0xff] 0.0
          %354 = vst [vmem:[%s315 + $0xc8] sm:$0xff] 0.0
          %355 = vst [vmem:[%s315 + $0xd0] sm:$0xff] 0.0
          %356 = vst [vmem:[%s315 + $0xd8] sm:$0xff] 0.0
          %357 = vst [vmem:[%s315 + $0xe0] sm:$0xff] 0.0
          %358 = vst [vmem:[%s315 + $0xe8] sm:$0xff] 0.0
          %359 = vst [vmem:[%s315 + $0xf0] sm:$0xff] 0.0
          %360 = vst [vmem:[%s315 + $0xf8] sm:$0xff] 0.0
        $region56: #{tpu_custom_call.1} parent=39 // pred_fallthru
          _
        %v361 = vld [vmem:[%s277] sm:$0xff]
        %v362 = vld [vmem:[%s277 + $0x8] sm:$0xff]
        %v363 = vld [vmem:[%s277 + $0x10] sm:$0xff]
        %v364 = vld [vmem:[%s277 + $0x18] sm:$0xff]
        %v365 = vld [vmem:[%s277 + $0x20] sm:$0xff]
        %v366 = vld [vmem:[%s277 + $0x28] sm:$0xff]
        %v367 = vld [vmem:[%s277 + $0x30] sm:$0xff]
        %v368 = vld [vmem:[%s277 + $0x38] sm:$0xff]
        %v369 = vld [vmem:[%s277 + $0x40] sm:$0xff]
        %v370 = vld [vmem:[%s277 + $0x48] sm:$0xff]
        %v371 = vld [vmem:[%s277 + $0x50] sm:$0xff]
        %v372 = vld [vmem:[%s277 + $0x58] sm:$0xff]
        %v373 = vld [vmem:[%s277 + $0x60] sm:$0xff]
        %v374 = vld [vmem:[%s277 + $0x68] sm:$0xff]
        %v375 = vld [vmem:[%s277 + $0x70] sm:$0xff]
        %v376 = vld [vmem:[%s277 + $0x78] sm:$0xff]
        %v377 = vld [vmem:[%s277 + $0x80] sm:$0xff]
        %v378 = vld [vmem:[%s277 + $0x88] sm:$0xff]
        %v379 = vld [vmem:[%s277 + $0x90] sm:$0xff]
        %v380 = vld [vmem:[%s277 + $0x98] sm:$0xff]
        %v381 = vld [vmem:[%s277 + $0xa0] sm:$0xff]
        %v382 = vld [vmem:[%s277 + $0xa8] sm:$0xff]
        %v383 = vld [vmem:[%s277 + $0xb0] sm:$0xff]
        %v384 = vld [vmem:[%s277 + $0xb8] sm:$0xff]
        %v385 = vld [vmem:[%s277 + $0xc0] sm:$0xff]
        %v386 = vld [vmem:[%s277 + $0xc8] sm:$0xff]
        %v387 = vld [vmem:[%s277 + $0xd0] sm:$0xff]
        %v388 = vld [vmem:[%s277 + $0xd8] sm:$0xff]
        %v389 = vld [vmem:[%s277 + $0xe0] sm:$0xff]
        %v390 = vld [vmem:[%s277 + $0xe8] sm:$0xff]
        %v391 = vld [vmem:[%s277 + $0xf0] sm:$0xff]
        %v392 = vld [vmem:[%s277 + $0xf8] sm:$0xff]
        %v393 = vpack.c.bf16 %v363, %v361
        %v394 = vpack.c.bf16 %v364, %v362
        %v395 = vpack.c.bf16 %v367, %v365
        %v396 = vpack.c.bf16 %v368, %v366
        %v397 = vpack.c.bf16 %v371, %v369
        %v398 = vpack.c.bf16 %v372, %v370
        %v399 = vpack.c.bf16 %v375, %v373
        %v400 = vpack.c.bf16 %v376, %v374
        %v401 = vpack.c.bf16 %v379, %v377
        %v402 = vpack.c.bf16 %v380, %v378
        %v403 = vpack.c.bf16 %v383, %v381
        %v404 = vpack.c.bf16 %v384, %v382
        %v405 = vpack.c.bf16 %v387, %v385
        %v406 = vpack.c.bf16 %v388, %v386
        %v407 = vpack.c.bf16 %v391, %v389
        %v408 = vpack.c.bf16 %v392, %v390
        %v409 = vld [vmem:[#allocation5] sm:$0xff]
        %v410 = vld [vmem:[#allocation5 + $0x8] sm:$0xff]
        %v411 = vld [vmem:[#allocation5 + $0x10] sm:$0xff]
        %v412 = vld [vmem:[#allocation5 + $0x18] sm:$0xff]
        %v413 = vld [vmem:[#allocation5 + $0x20] sm:$0xff]
        %v414 = vld [vmem:[#allocation5 + $0x28] sm:$0xff]
        %v415 = vld [vmem:[#allocation5 + $0x30] sm:$0xff]
        %v416 = vld [vmem:[#allocation5 + $0x38] sm:$0xff]
        %v417 = vld [vmem:[#allocation5 + $0x40] sm:$0xff]
        %v418 = vld [vmem:[#allocation5 + $0x48] sm:$0xff]
        %v419 = vld [vmem:[#allocation5 + $0x50] sm:$0xff]
        %v420 = vld [vmem:[#allocation5 + $0x58] sm:$0xff]
        %v421 = vld [vmem:[#allocation5 + $0x60] sm:$0xff]
        %v422 = vld [vmem:[#allocation5 + $0x68] sm:$0xff]
        %v423 = vld [vmem:[#allocation5 + $0x70] sm:$0xff]
        %v424 = vld [vmem:[#allocation5 + $0x78] sm:$0xff]
        %v425 = vld [vmem:[#allocation5 + $0x80] sm:$0xff]
        %v426 = vld [vmem:[#allocation5 + $0x88] sm:$0xff]
        %v427 = vld [vmem:[#allocation5 + $0x90] sm:$0xff]
        %v428 = vld [vmem:[#allocation5 + $0x98] sm:$0xff]
        %v429 = vld [vmem:[#allocation5 + $0xa0] sm:$0xff]
        %v430 = vld [vmem:[#allocation5 + $0xa8] sm:$0xff]
        %v431 = vld [vmem:[#allocation5 + $0xb0] sm:$0xff]
        %v432 = vld [vmem:[#allocation5 + $0xb8] sm:$0xff]
        %v433 = vld [vmem:[#allocation5 + $0xc0] sm:$0xff]
        %v434 = vld [vmem:[#allocation5 + $0xc8] sm:$0xff]
        %v435 = vld [vmem:[#allocation5 + $0xd0] sm:$0xff]
        %v436 = vld [vmem:[#allocation5 + $0xd8] sm:$0xff]
        %v437 = vld [vmem:[#allocation5 + $0xe0] sm:$0xff]
        %v438 = vld [vmem:[#allocation5 + $0xe8] sm:$0xff]
        %v439 = vld [vmem:[#allocation5 + $0xf0] sm:$0xff]
        %v440 = vld [vmem:[#allocation5 + $0xf8] sm:$0xff]
        %v441 = vld [vmem:[#allocation5 + $0x100] sm:$0xff]
        %v442 = vld [vmem:[#allocation5 + $0x108] sm:$0xff]
        %v443 = vld [vmem:[#allocation5 + $0x110] sm:$0xff]
        %v444 = vld [vmem:[#allocation5 + $0x118] sm:$0xff]
        %v445 = vld [vmem:[#allocation5 + $0x120] sm:$0xff]
        %v446 = vld [vmem:[#allocation5 + $0x128] sm:$0xff]
        %v447 = vld [vmem:[#allocation5 + $0x130] sm:$0xff]
        %v448 = vld [vmem:[#allocation5 + $0x138] sm:$0xff]
        %v449 = vld [vmem:[#allocation5 + $0x140] sm:$0xff]
        %v450 = vld [vmem:[#allocation5 + $0x148] sm:$0xff]
        %v451 = vld [vmem:[#allocation5 + $0x150] sm:$0xff]
        %v452 = vld [vmem:[#allocation5 + $0x158] sm:$0xff]
        %v453 = vld [vmem:[#allocation5 + $0x160] sm:$0xff]
        %v454 = vld [vmem:[#allocation5 + $0x168] sm:$0xff]
        %v455 = vld [vmem:[#allocation5 + $0x170] sm:$0xff]
        %v456 = vld [vmem:[#allocation5 + $0x178] sm:$0xff]
        %v457 = vld [vmem:[#allocation5 + $0x180] sm:$0xff]
        %v458 = vld [vmem:[#allocation5 + $0x188] sm:$0xff]
        %v459 = vld [vmem:[#allocation5 + $0x190] sm:$0xff]
        %v460 = vld [vmem:[#allocation5 + $0x198] sm:$0xff]
        %v461 = vld [vmem:[#allocation5 + $0x1a0] sm:$0xff]
        %v462 = vld [vmem:[#allocation5 + $0x1a8] sm:$0xff]
        %v463 = vld [vmem:[#allocation5 + $0x1b0] sm:$0xff]
        %v464 = vld [vmem:[#allocation5 + $0x1b8] sm:$0xff]
        %v465 = vld [vmem:[#allocation5 + $0x1c0] sm:$0xff]
        %v466 = vld [vmem:[#allocation5 + $0x1c8] sm:$0xff]
        %v467 = vld [vmem:[#allocation5 + $0x1d0] sm:$0xff]
        %v468 = vld [vmem:[#allocation5 + $0x1d8] sm:$0xff]
        %v469 = vld [vmem:[#allocation5 + $0x1e0] sm:$0xff]
        %v470 = vld [vmem:[#allocation5 + $0x1e8] sm:$0xff]
        %v471 = vld [vmem:[#allocation5 + $0x1f0] sm:$0xff]
        %v472 = vld [vmem:[#allocation5 + $0x1f8] sm:$0xff]
        %v473 = vld [vmem:[%s321] sm:$0xf]
        %v475 = vlaneseq
        %v476 = vshrl.u32 %v475, 7
        %v477 = vsub.s32 0, %v476
        %v478 = vrot.slane %v473, %v477
        %v479 = vlaneseq
        %v480 = vshrl.u32 %v479, 7
        %v481 = vsub.s32 1, %v480
        %v482 = vrot.slane %v473, %v481
        %v483 = vlaneseq
        %v484 = vshrl.u32 %v483, 7
        %v485 = vsub.s32 2, %v484
        %v486 = vrot.slane %v473, %v485
        %v487 = vlaneseq
        %v488 = vshrl.u32 %v487, 7
        %v489 = vsub.s32 3, %v488
        %v490 = vrot.slane %v473, %v489
        %v559 = vunpack.c.l.b16 %v409
        %v560 = vunpack.c.h.b16 %v409
        %v561 = vunpack.c.l.b16 %v410
        %v562 = vunpack.c.h.b16 %v410
        %v563 = vunpack.c.l.b16 %v411
        %v564 = vunpack.c.h.b16 %v411
        %v565 = vunpack.c.l.b16 %v412
        %v566 = vunpack.c.h.b16 %v412
        %v567 = vunpack.c.l.b16 %v413
        %v568 = vunpack.c.h.b16 %v413
        %v569 = vunpack.c.l.b16 %v414
        %v570 = vunpack.c.h.b16 %v414
        %v571 = vunpack.c.l.b16 %v415
        %v572 = vunpack.c.h.b16 %v415
        %v573 = vunpack.c.l.b16 %v416
        %v574 = vunpack.c.h.b16 %v416
        %v575 = vunpack.c.l.b16 %v417
        %v576 = vunpack.c.h.b16 %v417
        %v577 = vunpack.c.l.b16 %v418
        %v578 = vunpack.c.h.b16 %v418
        %v579 = vunpack.c.l.b16 %v419
        %v580 = vunpack.c.h.b16 %v419
        %v581 = vunpack.c.l.b16 %v420
        %v582 = vunpack.c.h.b16 %v420
        %v583 = vunpack.c.l.b16 %v421
        %v584 = vunpack.c.h.b16 %v421
        %v585 = vunpack.c.l.b16 %v422
        %v586 = vunpack.c.h.b16 %v422
        %v587 = vunpack.c.l.b16 %v423
        %v588 = vunpack.c.h.b16 %v423
        %v589 = vunpack.c.l.b16 %v424
        %v590 = vunpack.c.h.b16 %v424
        %v591 = vunpack.c.l.b16 %v425
        %v592 = vunpack.c.h.b16 %v425
        %v593 = vunpack.c.l.b16 %v426
        %v594 = vunpack.c.h.b16 %v426
        %v595 = vunpack.c.l.b16 %v427
        %v596 = vunpack.c.h.b16 %v427
        %v597 = vunpack.c.l.b16 %v428
        %v598 = vunpack.c.h.b16 %v428
        %v599 = vunpack.c.l.b16 %v429
        %v600 = vunpack.c.h.b16 %v429
        %v601 = vunpack.c.l.b16 %v430
        %v602 = vunpack.c.h.b16 %v430
        %v603 = vunpack.c.l.b16 %v431
        %v604 = vunpack.c.h.b16 %v431
        %v605 = vunpack.c.l.b16 %v432
        %v606 = vunpack.c.h.b16 %v432
        %v607 = vunpack.c.l.b16 %v433
        %v608 = vunpack.c.h.b16 %v433
        %v609 = vunpack.c.l.b16 %v434
        %v610 = vunpack.c.h.b16 %v434
        %v611 = vunpack.c.l.b16 %v435
        %v612 = vunpack.c.h.b16 %v435
        %v613 = vunpack.c.l.b16 %v436
        %v614 = vunpack.c.h.b16 %v436
        %v615 = vunpack.c.l.b16 %v437
        %v616 = vunpack.c.h.b16 %v437
        %v617 = vunpack.c.l.b16 %v438
        %v618 = vunpack.c.h.b16 %v438
        %v619 = vunpack.c.l.b16 %v439
        %v620 = vunpack.c.h.b16 %v439
        %v621 = vunpack.c.l.b16 %v440
        %v622 = vunpack.c.h.b16 %v440
        %v623 = vunpack.c.l.b16 %v441
        %v624 = vunpack.c.h.b16 %v441
        %v625 = vunpack.c.l.b16 %v442
        %v626 = vunpack.c.h.b16 %v442
        %v627 = vunpack.c.l.b16 %v443
        %v628 = vunpack.c.h.b16 %v443
        %v629 = vunpack.c.l.b16 %v444
        %v630 = vunpack.c.h.b16 %v444
        %v631 = vunpack.c.l.b16 %v445
        %v632 = vunpack.c.h.b16 %v445
        %v633 = vunpack.c.l.b16 %v446
        %v634 = vunpack.c.h.b16 %v446
        %v635 = vunpack.c.l.b16 %v447
        %v636 = vunpack.c.h.b16 %v447
        %v637 = vunpack.c.l.b16 %v448
        %v638 = vunpack.c.h.b16 %v448
        %v639 = vunpack.c.l.b16 %v449
        %v640 = vunpack.c.h.b16 %v449
        %v641 = vunpack.c.l.b16 %v450
        %v642 = vunpack.c.h.b16 %v450
        %v643 = vunpack.c.l.b16 %v451
        %v644 = vunpack.c.h.b16 %v451
        %v645 = vunpack.c.l.b16 %v452
        %v646 = vunpack.c.h.b16 %v452
        %v647 = vunpack.c.l.b16 %v453
        %v648 = vunpack.c.h.b16 %v453
        %v649 = vunpack.c.l.b16 %v454
        %v650 = vunpack.c.h.b16 %v454
        %v651 = vunpack.c.l.b16 %v455
        %v652 = vunpack.c.h.b16 %v455
        %v653 = vunpack.c.l.b16 %v456
        %v654 = vunpack.c.h.b16 %v456
        %v655 = vunpack.c.l.b16 %v457
        %v656 = vunpack.c.h.b16 %v457
        %v657 = vunpack.c.l.b16 %v458
        %v658 = vunpack.c.h.b16 %v458
        %v659 = vunpack.c.l.b16 %v459
        %v660 = vunpack.c.h.b16 %v459
        %v661 = vunpack.c.l.b16 %v460
        %v662 = vunpack.c.h.b16 %v460
        %v663 = vunpack.c.l.b16 %v461
        %v664 = vunpack.c.h.b16 %v461
        %v665 = vunpack.c.l.b16 %v462
        %v666 = vunpack.c.h.b16 %v462
        %v667 = vunpack.c.l.b16 %v463
        %v668 = vunpack.c.h.b16 %v463
        %v669 = vunpack.c.l.b16 %v464
        %v670 = vunpack.c.h.b16 %v464
        %v671 = vunpack.c.l.b16 %v465
        %v672 = vunpack.c.h.b16 %v465
        %v673 = vunpack.c.l.b16 %v466
        %v674 = vunpack.c.h.b16 %v466
        %v675 = vunpack.c.l.b16 %v467
        %v676 = vunpack.c.h.b16 %v467
        %v677 = vunpack.c.l.b16 %v468
        %v678 = vunpack.c.h.b16 %v468
        %v679 = vunpack.c.l.b16 %v469
        %v680 = vunpack.c.h.b16 %v469
        %v681 = vunpack.c.l.b16 %v470
        %v682 = vunpack.c.h.b16 %v470
        %v683 = vunpack.c.l.b16 %v471
        %v684 = vunpack.c.h.b16 %v471
        %v685 = vunpack.c.l.b16 %v472
        %v686 = vunpack.c.h.b16 %v472
        %v687 = vpack.c.b16 %v563, %v559
        %v688 = vpack.c.b16 %v564, %v560
        %v689 = vpack.c.b16 %v565, %v561
        %v690 = vpack.c.b16 %v566, %v562
        %v691 = vpack.c.b16 %v571, %v567
        %v692 = vpack.c.b16 %v572, %v568
        %v693 = vpack.c.b16 %v573, %v569
        %v694 = vpack.c.b16 %v574, %v570
        %v695 = vpack.c.b16 %v579, %v575
        %v696 = vpack.c.b16 %v580, %v576
        %v697 = vpack.c.b16 %v581, %v577
        %v698 = vpack.c.b16 %v582, %v578
        %v699 = vpack.c.b16 %v587, %v583
        %v700 = vpack.c.b16 %v588, %v584
        %v701 = vpack.c.b16 %v589, %v585
        %v702 = vpack.c.b16 %v590, %v586
        %v703 = vpack.c.b16 %v595, %v591
        %v704 = vpack.c.b16 %v596, %v592
        %v705 = vpack.c.b16 %v597, %v593
        %v706 = vpack.c.b16 %v598, %v594
        %v707 = vpack.c.b16 %v603, %v599
        %v708 = vpack.c.b16 %v604, %v600
        %v709 = vpack.c.b16 %v605, %v601
        %v710 = vpack.c.b16 %v606, %v602
        %v711 = vpack.c.b16 %v611, %v607
        %v712 = vpack.c.b16 %v612, %v608
        %v713 = vpack.c.b16 %v613, %v609
        %v714 = vpack.c.b16 %v614, %v610
        %v715 = vpack.c.b16 %v619, %v615
        %v716 = vpack.c.b16 %v620, %v616
        %v717 = vpack.c.b16 %v621, %v617
        %v718 = vpack.c.b16 %v622, %v618
        %v719 = vpack.c.b16 %v627, %v623
        %v720 = vpack.c.b16 %v628, %v624
        %v721 = vpack.c.b16 %v629, %v625
        %v722 = vpack.c.b16 %v630, %v626
        %v723 = vpack.c.b16 %v635, %v631
        %v724 = vpack.c.b16 %v636, %v632
        %v725 = vpack.c.b16 %v637, %v633
        %v726 = vpack.c.b16 %v638, %v634
        %v727 = vpack.c.b16 %v643, %v639
        %v728 = vpack.c.b16 %v644, %v640
        %v729 = vpack.c.b16 %v645, %v641
        %v730 = vpack.c.b16 %v646, %v642
        %v731 = vpack.c.b16 %v651, %v647
        %v732 = vpack.c.b16 %v652, %v648
        %v733 = vpack.c.b16 %v653, %v649
        %v734 = vpack.c.b16 %v654, %v650
        %v735 = vpack.c.b16 %v659, %v655
        %v736 = vpack.c.b16 %v660, %v656
        %v737 = vpack.c.b16 %v661, %v657
        %v738 = vpack.c.b16 %v662, %v658
        %v739 = vpack.c.b16 %v667, %v663
        %v740 = vpack.c.b16 %v668, %v664
        %v741 = vpack.c.b16 %v669, %v665
        %v742 = vpack.c.b16 %v670, %v666
        %v743 = vpack.c.b16 %v675, %v671
        %v744 = vpack.c.b16 %v676, %v672
        %v745 = vpack.c.b16 %v677, %v673
        %v746 = vpack.c.b16 %v678, %v674
        %v747 = vpack.c.b16 %v683, %v679
        %v748 = vpack.c.b16 %v684, %v680
        %v749 = vpack.c.b16 %v685, %v681
        %v750 = vpack.c.b16 %v686, %v682
        %815 = vmatprep.subr.bf16.mxu0 %v688
        %816 = vmatpush1.bf16.msra.mxu0 %v687
        %817 = vmatprep.subr.bf16.mxu0 %v692
        %818 = vmatpush1.bf16.msra.mxu0 %v691
        %819 = vmatprep.subr.bf16.mxu0 %v696
        %820 = vmatpush1.bf16.msra.mxu0 %v695
        %821 = vmatprep.subr.bf16.mxu0 %v700
        %822 = vmatpush1.bf16.msra.mxu0 %v699
        %823 = vmatprep.subr.bf16.mxu0 %v704
        %824 = vmatpush1.bf16.msra.mxu0 %v703
        %825 = vmatprep.subr.bf16.mxu0 %v708
        %826 = vmatpush1.bf16.msra.mxu0 %v707
        %827 = vmatprep.subr.bf16.mxu0 %v712
        %828 = vmatpush1.bf16.msra.mxu0 %v711
        %829 = vmatprep.subr.bf16.mxu0 %v716
        %830 = vmatpush1.bf16.msra.mxu0 %v715
        %831 = vmatprep.subr.bf16.mxu0 %v720
        %832 = vmatpush1.bf16.msra.mxu0 %v719
        %833 = vmatprep.subr.bf16.mxu0 %v724
        %834 = vmatpush1.bf16.msra.mxu0 %v723
        %835 = vmatprep.subr.bf16.mxu0 %v728
        %836 = vmatpush1.bf16.msra.mxu0 %v727
        %837 = vmatprep.subr.bf16.mxu0 %v732
        %838 = vmatpush1.bf16.msra.mxu0 %v731
        %839 = vmatprep.subr.bf16.mxu0 %v736
        %840 = vmatpush1.bf16.msra.mxu0 %v735
        %841 = vmatprep.subr.bf16.mxu0 %v740
        %842 = vmatpush1.bf16.msra.mxu0 %v739
        %843 = vmatprep.subr.bf16.mxu0 %v744
        %844 = vmatpush1.bf16.msra.mxu0 %v743
        %845 = vmatprep.subr.bf16.mxu0 %v748
        %846 = vmatpush1.bf16.msra.mxu0 %v747
        %847 = vmatprep.mubr.bf16.mxu0 %v394
        %848 = vmatmul.mubr.bf16.gmra.mrb[0].mxu0 %v393
        %v849 = vpop.f32.mrb[0].mxu0
        %v850 = vadd.f32 %v478, %v849
        %v851 = vpop.f32.mrb[0].mxu0
        %v852 = vadd.f32 %v482, %v851
        %v853 = vpop.f32.mrb[0].mxu0
        %v854 = vadd.f32 %v478, %v853
        %v855 = vpop.f32.mrb[0].mxu0
        %v856 = vadd.f32 %v482, %v855
        %857 = vmatprep.mubr.bf16.mxu0 %v396
        %858 = vmatmul.mubr.bf16.gmra.mrb[0].mxu0 %v395
        %v859 = vpop.f32.mrb[0].mxu0
        %v860 = vadd.f32 %v478, %v859
        %v861 = vpop.f32.mrb[0].mxu0
        %v862 = vadd.f32 %v482, %v861
        %v863 = vpop.f32.mrb[0].mxu0
        %v864 = vadd.f32 %v478, %v863
        %v865 = vpop.f32.mrb[0].mxu0
        %v866 = vadd.f32 %v482, %v865
        %867 = vmatprep.mubr.bf16.mxu0 %v398
        %868 = vmatmul.mubr.bf16.gmra.mrb[0].mxu0 %v397
        %v869 = vpop.f32.mrb[0].mxu0
        %v870 = vadd.f32 %v478, %v869
        %v871 = vpop.f32.mrb[0].mxu0
        %v872 = vadd.f32 %v482, %v871
        %v873 = vpop.f32.mrb[0].mxu0
        %v874 = vadd.f32 %v478, %v873
        %v875 = vpop.f32.mrb[0].mxu0
        %v876 = vadd.f32 %v482, %v875
        %877 = vmatprep.mubr.bf16.mxu0 %v400
        %878 = vmatmul.mubr.bf16.gmra.mrb[0].mxu0 %v399
        %v879 = vpop.f32.mrb[0].mxu0
        %v880 = vadd.f32 %v478, %v879
        %v881 = vpop.f32.mrb[0].mxu0
        %v882 = vadd.f32 %v482, %v881
        %v883 = vpop.f32.mrb[0].mxu0
        %v884 = vadd.f32 %v478, %v883
        %v885 = vpop.f32.mrb[0].mxu0
        %v886 = vadd.f32 %v482, %v885
        %887 = vmatprep.mubr.bf16.mxu0 %v402
        %888 = vmatmul.mubr.bf16.gmra.mrb[0].mxu0 %v401
        %v889 = vpop.f32.mrb[0].mxu0
        %v890 = vadd.f32 %v478, %v889
        %v891 = vpop.f32.mrb[0].mxu0
        %v892 = vadd.f32 %v482, %v891
        %v893 = vpop.f32.mrb[0].mxu0
        %v894 = vadd.f32 %v478, %v893
        %v895 = vpop.f32.mrb[0].mxu0
        %v896 = vadd.f32 %v482, %v895
        %897 = vmatprep.mubr.bf16.mxu0 %v404
        %898 = vmatmul.mubr.bf16.gmra.mrb[0].mxu0 %v403
        %v899 = vpop.f32.mrb[0].mxu0
        %v900 = vadd.f32 %v478, %v899
        %v901 = vpop.f32.mrb[0].mxu0
        %v902 = vadd.f32 %v482, %v901
        %v903 = vpop.f32.mrb[0].mxu0
        %v904 = vadd.f32 %v478, %v903
        %v905 = vpop.f32.mrb[0].mxu0
        %v906 = vadd.f32 %v482, %v905
        %907 = vmatprep.mubr.bf16.mxu0 %v406
        %908 = vmatmul.mubr.bf16.gmra.mrb[0].mxu0 %v405
        %v909 = vpop.f32.mrb[0].mxu0
        %v910 = vadd.f32 %v478, %v909
        %v911 = vpop.f32.mrb[0].mxu0
        %v912 = vadd.f32 %v482, %v911
        %v913 = vpop.f32.mrb[0].mxu0
        %v914 = vadd.f32 %v478, %v913
        %v915 = vpop.f32.mrb[0].mxu0
        %v916 = vadd.f32 %v482, %v915
        %917 = vmatprep.mubr.bf16.mxu0 %v408
        %918 = vmatmul.mubr.bf16.gmra.mrb[0].mxu0 %v407
        %v919 = vpop.f32.mrb[0].mxu0
        %v920 = vadd.f32 %v478, %v919
        %v921 = vpop.f32.mrb[0].mxu0
        %v922 = vadd.f32 %v482, %v921
        %v923 = vpop.f32.mrb[0].mxu0
        %v924 = vadd.f32 %v478, %v923
        %v925 = vpop.f32.mrb[0].mxu0
        %v926 = vadd.f32 %v482, %v925
        %927 = vdwg.mxu0
        %928 = vmatprep.subr.bf16.mxu0 %v690
        %929 = vmatpush1.bf16.msra.mxu0 %v689
        %930 = vmatprep.subr.bf16.mxu0 %v694
        %931 = vmatpush1.bf16.msra.mxu0 %v693
        %932 = vmatprep.subr.bf16.mxu0 %v698
        %933 = vmatpush1.bf16.msra.mxu0 %v697
        %934 = vmatprep.subr.bf16.mxu0 %v702
        %935 = vmatpush1.bf16.msra.mxu0 %v701
        %936 = vmatprep.subr.bf16.mxu0 %v706
        %937 = vmatpush1.bf16.msra.mxu0 %v705
        %938 = vmatprep.subr.bf16.mxu0 %v710
        %939 = vmatpush1.bf16.msra.mxu0 %v709
        %940 = vmatprep.subr.bf16.mxu0 %v714
        %941 = vmatpush1.bf16.msra.mxu0 %v713
        %942 = vmatprep.subr.bf16.mxu0 %v718
        %943 = vmatpush1.bf16.msra.mxu0 %v717
        %944 = vmatprep.subr.bf16.mxu0 %v722
        %945 = vmatpush1.bf16.msra.mxu0 %v721
        %946 = vmatprep.subr.bf16.mxu0 %v726
        %947 = vmatpush1.bf16.msra.mxu0 %v725
        %948 = vmatprep.subr.bf16.mxu0 %v730
        %949 = vmatpush1.bf16.msra.mxu0 %v729
        %950 = vmatprep.subr.bf16.mxu0 %v734
        %951 = vmatpush1.bf16.msra.mxu0 %v733
        %952 = vmatprep.subr.bf16.mxu0 %v738
        %953 = vmatpush1.bf16.msra.mxu0 %v737
        %954 = vmatprep.subr.bf16.mxu0 %v742
        %955 = vmatpush1.bf16.msra.mxu0 %v741
        %956 = vmatprep.subr.bf16.mxu0 %v746
        %957 = vmatpush1.bf16.msra.mxu0 %v745
        %958 = vmatprep.subr.bf16.mxu0 %v750
        %959 = vmatpush1.bf16.msra.mxu0 %v749
        %960 = vmatprep.mubr.bf16.mxu0 %v394
        %961 = vmatmul.mubr.bf16.gmra.mrb[0].mxu0 %v393
        %v962 = vpop.f32.mrb[0].mxu0
        %v963 = vadd.f32 %v486, %v962
        %v964 = vpop.f32.mrb[0].mxu0
        %v965 = vadd.f32 %v490, %v964
        %v966 = vpop.f32.mrb[0].mxu0
        %v967 = vadd.f32 %v486, %v966
        %v968 = vpop.f32.mrb[0].mxu0
        %v969 = vadd.f32 %v490, %v968
        %970 = vmatprep.mubr.bf16.mxu0 %v396
        %971 = vmatmul.mubr.bf16.gmra.mrb[0].mxu0 %v395
        %v972 = vpop.f32.mrb[0].mxu0
        %v973 = vadd.f32 %v486, %v972
        %v974 = vpop.f32.mrb[0].mxu0
        %v975 = vadd.f32 %v490, %v974
        %v976 = vpop.f32.mrb[0].mxu0
        %v977 = vadd.f32 %v486, %v976
        %v978 = vpop.f32.mrb[0].mxu0
        %v979 = vadd.f32 %v490, %v978
        %980 = vmatprep.mubr.bf16.mxu0 %v398
        %981 = vmatmul.mubr.bf16.gmra.mrb[0].mxu0 %v397
        %v982 = vpop.f32.mrb[0].mxu0
        %v983 = vadd.f32 %v486, %v982
        %v984 = vpop.f32.mrb[0].mxu0
        %v985 = vadd.f32 %v490, %v984
        %v986 = vpop.f32.mrb[0].mxu0
        %v987 = vadd.f32 %v486, %v986
        %v988 = vpop.f32.mrb[0].mxu0
        %v989 = vadd.f32 %v490, %v988
        %990 = vmatprep.mubr.bf16.mxu0 %v400
        %991 = vmatmul.mubr.bf16.gmra.mrb[0].mxu0 %v399
        %v992 = vpop.f32.mrb[0].mxu0
        %v993 = vadd.f32 %v486, %v992
        %v994 = vpop.f32.mrb[0].mxu0
        %v995 = vadd.f32 %v490, %v994
        %v996 = vpop.f32.mrb[0].mxu0
        %v997 = vadd.f32 %v486, %v996
        %v998 = vpop.f32.mrb[0].mxu0
        %v999 = vadd.f32 %v490, %v998
        %1000 = vmatprep.mubr.bf16.mxu0 %v402
        %1001 = vmatmul.mubr.bf16.gmra.mrb[0].mxu0 %v401
        %v1002 = vpop.f32.mrb[0].mxu0
        %v1003 = vadd.f32 %v486, %v1002
        %v1004 = vpop.f32.mrb[0].mxu0
        %v1005 = vadd.f32 %v490, %v1004
        %v1006 = vpop.f32.mrb[0].mxu0
        %v1007 = vadd.f32 %v486, %v1006
        %v1008 = vpop.f32.mrb[0].mxu0
        %v1009 = vadd.f32 %v490, %v1008
        %1010 = vmatprep.mubr.bf16.mxu0 %v404
        %1011 = vmatmul.mubr.bf16.gmra.mrb[0].mxu0 %v403
        %v1012 = vpop.f32.mrb[0].mxu0
        %v1013 = vadd.f32 %v486, %v1012
        %v1014 = vpop.f32.mrb[0].mxu0
        %v1015 = vadd.f32 %v490, %v1014
        %v1016 = vpop.f32.mrb[0].mxu0
        %v1017 = vadd.f32 %v486, %v1016
        %v1018 = vpop.f32.mrb[0].mxu0
        %v1019 = vadd.f32 %v490, %v1018
        %1020 = vmatprep.mubr.bf16.mxu0 %v406
        %1021 = vmatmul.mubr.bf16.gmra.mrb[0].mxu0 %v405
        %v1022 = vpop.f32.mrb[0].mxu0
        %v1023 = vadd.f32 %v486, %v1022
        %v1024 = vpop.f32.mrb[0].mxu0
        %v1025 = vadd.f32 %v490, %v1024
        %v1026 = vpop.f32.mrb[0].mxu0
        %v1027 = vadd.f32 %v486, %v1026
        %v1028 = vpop.f32.mrb[0].mxu0
        %v1029 = vadd.f32 %v490, %v1028
        %1030 = vmatprep.mubr.bf16.mxu0 %v408
        %1031 = vmatmul.mubr.bf16.gmra.mrb[0].mxu0 %v407
        %v1032 = vpop.f32.mrb[0].mxu0
        %v1033 = vadd.f32 %v486, %v1032
        %v1034 = vpop.f32.mrb[0].mxu0
        %v1035 = vadd.f32 %v490, %v1034
        %v1036 = vpop.f32.mrb[0].mxu0
        %v1037 = vadd.f32 %v486, %v1036
        %v1038 = vpop.f32.mrb[0].mxu0
        %v1039 = vadd.f32 %v490, %v1038
        %1040 = vdwg.mxu0
        %v1041 = vmul.f32 %v850, 0.044715
        %v1042 = vmul.f32 %v852, 0.044715
        %v1043 = vmul.f32 %v963, 0.044715
        %v1044 = vmul.f32 %v965, 0.044715
        %v1045 = vmul.f32 %v854, 0.044715
        %v1046 = vmul.f32 %v856, 0.044715
        %v1047 = vmul.f32 %v967, 0.044715
        %v1048 = vmul.f32 %v969, 0.044715
        %v1049 = vmul.f32 %v860, 0.044715
        %v1050 = vmul.f32 %v862, 0.044715
        %v1051 = vmul.f32 %v973, 0.044715
        %v1052 = vmul.f32 %v975, 0.044715
        %v1053 = vmul.f32 %v864, 0.044715
        %v1054 = vmul.f32 %v866, 0.044715
        %v1055 = vmul.f32 %v977, 0.044715
        %v1056 = vmul.f32 %v979, 0.044715
        %v1057 = vmul.f32 %v870, 0.044715
        %v1058 = vmul.f32 %v872, 0.044715
        %v1059 = vmul.f32 %v983, 0.044715
        %v1060 = vmul.f32 %v985, 0.044715
        %v1061 = vmul.f32 %v874, 0.044715
        %v1062 = vmul.f32 %v876, 0.044715
        %v1063 = vmul.f32 %v987, 0.044715
        %v1064 = vmul.f32 %v989, 0.044715
        %v1065 = vmul.f32 %v880, 0.044715
        %v1066 = vmul.f32 %v882, 0.044715
        %v1067 = vmul.f32 %v993, 0.044715
        %v1068 = vmul.f32 %v995, 0.044715
        %v1069 = vmul.f32 %v884, 0.044715
        %v1070 = vmul.f32 %v886, 0.044715
        %v1071 = vmul.f32 %v997, 0.044715
        %v1072 = vmul.f32 %v999, 0.044715
        %v1073 = vmul.f32 %v890, 0.044715
        %v1074 = vmul.f32 %v892, 0.044715
        %v1075 = vmul.f32 %v1003, 0.044715
        %v1076 = vmul.f32 %v1005, 0.044715
        %v1077 = vmul.f32 %v894, 0.044715
        %v1078 = vmul.f32 %v896, 0.044715
        %v1079 = vmul.f32 %v1007, 0.044715
        %v1080 = vmul.f32 %v1009, 0.044715
        %v1081 = vmul.f32 %v900, 0.044715
        %v1082 = vmul.f32 %v902, 0.044715
        %v1083 = vmul.f32 %v1013, 0.044715
        %v1084 = vmul.f32 %v1015, 0.044715
        %v1085 = vmul.f32 %v904, 0.044715
        %v1086 = vmul.f32 %v906, 0.044715
        %v1087 = vmul.f32 %v1017, 0.044715
        %v1088 = vmul.f32 %v1019, 0.044715
        %v1089 = vmul.f32 %v910, 0.044715
        %v1090 = vmul.f32 %v912, 0.044715
        %v1091 = vmul.f32 %v1023, 0.044715
        %v1092 = vmul.f32 %v1025, 0.044715
        %v1093 = vmul.f32 %v914, 0.044715
        %v1094 = vmul.f32 %v916, 0.044715
        %v1095 = vmul.f32 %v1027, 0.044715
        %v1096 = vmul.f32 %v1029, 0.044715
        %v1097 = vmul.f32 %v920, 0.044715
        %v1098 = vmul.f32 %v922, 0.044715
        %v1099 = vmul.f32 %v1033, 0.044715
        %v1100 = vmul.f32 %v1035, 0.044715
        %v1101 = vmul.f32 %v924, 0.044715
        %v1102 = vmul.f32 %v926, 0.044715
        %v1103 = vmul.f32 %v1037, 0.044715
        %v1104 = vmul.f32 %v1039, 0.044715
        %v1105 = vmul.f32 %v1041, %v850
        %v1106 = vmul.f32 %v1042, %v852
        %v1107 = vmul.f32 %v1043, %v963
        %v1108 = vmul.f32 %v1044, %v965
        %v1109 = vmul.f32 %v1045, %v854
        %v1110 = vmul.f32 %v1046, %v856
        %v1111 = vmul.f32 %v1047, %v967
        %v1112 = vmul.f32 %v1048, %v969
        %v1113 = vmul.f32 %v1049, %v860
        %v1114 = vmul.f32 %v1050, %v862
        %v1115 = vmul.f32 %v1051, %v973
        %v1116 = vmul.f32 %v1052, %v975
        %v1117 = vmul.f32 %v1053, %v864
        %v1118 = vmul.f32 %v1054, %v866
        %v1119 = vmul.f32 %v1055, %v977
        %v1120 = vmul.f32 %v1056, %v979
        %v1121 = vmul.f32 %v1057, %v870
        %v1122 = vmul.f32 %v1058, %v872
        %v1123 = vmul.f32 %v1059, %v983
        %v1124 = vmul.f32 %v1060, %v985
        %v1125 = vmul.f32 %v1061, %v874
        %v1126 = vmul.f32 %v1062, %v876
        %v1127 = vmul.f32 %v1063, %v987
        %v1128 = vmul.f32 %v1064, %v989
        %v1129 = vmul.f32 %v1065, %v880
        %v1130 = vmul.f32 %v1066, %v882
        %v1131 = vmul.f32 %v1067, %v993
        %v1132 = vmul.f32 %v1068, %v995
        %v1133 = vmul.f32 %v1069, %v884
        %v1134 = vmul.f32 %v1070, %v886
        %v1135 = vmul.f32 %v1071, %v997
        %v1136 = vmul.f32 %v1072, %v999
        %v1137 = vmul.f32 %v1073, %v890
        %v1138 = vmul.f32 %v1074, %v892
        %v1139 = vmul.f32 %v1075, %v1003
        %v1140 = vmul.f32 %v1076, %v1005
        %v1141 = vmul.f32 %v1077, %v894
        %v1142 = vmul.f32 %v1078, %v896
        %v1143 = vmul.f32 %v1079, %v1007
        %v1144 = vmul.f32 %v1080, %v1009
        %v1145 = vmul.f32 %v1081, %v900
        %v1146 = vmul.f32 %v1082, %v902
        %v1147 = vmul.f32 %v1083, %v1013
        %v1148 = vmul.f32 %v1084, %v1015
        %v1149 = vmul.f32 %v1085, %v904
        %v1150 = vmul.f32 %v1086, %v906
        %v1151 = vmul.f32 %v1087, %v1017
        %v1152 = vmul.f32 %v1088, %v1019
        %v1153 = vmul.f32 %v1089, %v910
        %v1154 = vmul.f32 %v1090, %v912
        %v1155 = vmul.f32 %v1091, %v1023
        %v1156 = vmul.f32 %v1092, %v1025
        %v1157 = vmul.f32 %v1093, %v914
        %v1158 = vmul.f32 %v1094, %v916
        %v1159 = vmul.f32 %v1095, %v1027
        %v1160 = vmul.f32 %v1096, %v1029
        %v1161 = vmul.f32 %v1097, %v920
        %v1162 = vmul.f32 %v1098, %v922
        %v1163 = vmul.f32 %v1099, %v1033
        %v1164 = vmul.f32 %v1100, %v1035
        %v1165 = vmul.f32 %v1101, %v924
        %v1166 = vmul.f32 %v1102, %v926
        %v1167 = vmul.f32 %v1103, %v1037
        %v1168 = vmul.f32 %v1104, %v1039
        %v1169 = vmul.f32 %v1105, %v850
        %v1170 = vmul.f32 %v1106, %v852
        %v1171 = vmul.f32 %v1107, %v963
        %v1172 = vmul.f32 %v1108, %v965
        %v1173 = vmul.f32 %v1109, %v854
        %v1174 = vmul.f32 %v1110, %v856
        %v1175 = vmul.f32 %v1111, %v967
        %v1176 = vmul.f32 %v1112, %v969
        %v1177 = vmul.f32 %v1113, %v860
        %v1178 = vmul.f32 %v1114, %v862
        %v1179 = vmul.f32 %v1115, %v973
        %v1180 = vmul.f32 %v1116, %v975
        %v1181 = vmul.f32 %v1117, %v864
        %v1182 = vmul.f32 %v1118, %v866
        %v1183 = vmul.f32 %v1119, %v977
        %v1184 = vmul.f32 %v1120, %v979
        %v1185 = vmul.f32 %v1121, %v870
        %v1186 = vmul.f32 %v1122, %v872
        %v1187 = vmul.f32 %v1123, %v983
        %v1188 = vmul.f32 %v1124, %v985
        %v1189 = vmul.f32 %v1125, %v874
        %v1190 = vmul.f32 %v1126, %v876
        %v1191 = vmul.f32 %v1127, %v987
        %v1192 = vmul.f32 %v1128, %v989
        %v1193 = vmul.f32 %v1129, %v880
        %v1194 = vmul.f32 %v1130, %v882
        %v1195 = vmul.f32 %v1131, %v993
        %v1196 = vmul.f32 %v1132, %v995
        %v1197 = vmul.f32 %v1133, %v884
        %v1198 = vmul.f32 %v1134, %v886
        %v1199 = vmul.f32 %v1135, %v997
        %v1200 = vmul.f32 %v1136, %v999
        %v1201 = vmul.f32 %v1137, %v890
        %v1202 = vmul.f32 %v1138, %v892
        %v1203 = vmul.f32 %v1139, %v1003
        %v1204 = vmul.f32 %v1140, %v1005
        %v1205 = vmul.f32 %v1141, %v894
        %v1206 = vmul.f32 %v1142, %v896
        %v1207 = vmul.f32 %v1143, %v1007
        %v1208 = vmul.f32 %v1144, %v1009
        %v1209 = vmul.f32 %v1145, %v900
        %v1210 = vmul.f32 %v1146, %v902
        %v1211 = vmul.f32 %v1147, %v1013
        %v1212 = vmul.f32 %v1148, %v1015
        %v1213 = vmul.f32 %v1149, %v904
        %v1214 = vmul.f32 %v1150, %v906
        %v1215 = vmul.f32 %v1151, %v1017
        %v1216 = vmul.f32 %v1152, %v1019
        %v1217 = vmul.f32 %v1153, %v910
        %v1218 = vmul.f32 %v1154, %v912
        %v1219 = vmul.f32 %v1155, %v1023
        %v1220 = vmul.f32 %v1156, %v1025
        %v1221 = vmul.f32 %v1157, %v914
        %v1222 = vmul.f32 %v1158, %v916
        %v1223 = vmul.f32 %v1159, %v1027
        %v1224 = vmul.f32 %v1160, %v1029
        %v1225 = vmul.f32 %v1161, %v920
        %v1226 = vmul.f32 %v1162, %v922
        %v1227 = vmul.f32 %v1163, %v1033
        %v1228 = vmul.f32 %v1164, %v1035
        %v1229 = vmul.f32 %v1165, %v924
        %v1230 = vmul.f32 %v1166, %v926
        %v1231 = vmul.f32 %v1167, %v1037
        %v1232 = vmul.f32 %v1168, %v1039
        %v1233 = vadd.f32 %v850, %v1169
        %v1234 = vadd.f32 %v852, %v1170
        %v1235 = vadd.f32 %v963, %v1171
        %v1236 = vadd.f32 %v965, %v1172
        %v1237 = vadd.f32 %v854, %v1173
        %v1238 = vadd.f32 %v856, %v1174
        %v1239 = vadd.f32 %v967, %v1175
        %v1240 = vadd.f32 %v969, %v1176
        %v1241 = vadd.f32 %v860, %v1177
        %v1242 = vadd.f32 %v862, %v1178
        %v1243 = vadd.f32 %v973, %v1179
        %v1244 = vadd.f32 %v975, %v1180
        %v1245 = vadd.f32 %v864, %v1181
        %v1246 = vadd.f32 %v866, %v1182
        %v1247 = vadd.f32 %v977, %v1183
        %v1248 = vadd.f32 %v979, %v1184
        %v1249 = vadd.f32 %v870, %v1185
        %v1250 = vadd.f32 %v872, %v1186
        %v1251 = vadd.f32 %v983, %v1187
        %v1252 = vadd.f32 %v985, %v1188
        %v1253 = vadd.f32 %v874, %v1189
        %v1254 = vadd.f32 %v876, %v1190
        %v1255 = vadd.f32 %v987, %v1191
        %v1256 = vadd.f32 %v989, %v1192
        %v1257 = vadd.f32 %v880, %v1193
        %v1258 = vadd.f32 %v882, %v1194
        %v1259 = vadd.f32 %v993, %v1195
        %v1260 = vadd.f32 %v995, %v1196
        %v1261 = vadd.f32 %v884, %v1197
        %v1262 = vadd.f32 %v886, %v1198
        %v1263 = vadd.f32 %v997, %v1199
        %v1264 = vadd.f32 %v999, %v1200
        %v1265 = vadd.f32 %v890, %v1201
        %v1266 = vadd.f32 %v892, %v1202
        %v1267 = vadd.f32 %v1003, %v1203
        %v1268 = vadd.f32 %v1005, %v1204
        %v1269 = vadd.f32 %v894, %v1205
        %v1270 = vadd.f32 %v896, %v1206
        %v1271 = vadd.f32 %v1007, %v1207
        %v1272 = vadd.f32 %v1009, %v1208
        %v1273 = vadd.f32 %v900, %v1209
        %v1274 = vadd.f32 %v902, %v1210
        %v1275 = vadd.f32 %v1013, %v1211
        %v1276 = vadd.f32 %v1015, %v1212
        %v1277 = vadd.f32 %v904, %v1213
        %v1278 = vadd.f32 %v906, %v1214
        %v1279 = vadd.f32 %v1017, %v1215
        %v1280 = vadd.f32 %v1019, %v1216
        %v1281 = vadd.f32 %v910, %v1217
        %v1282 = vadd.f32 %v912, %v1218
        %v1283 = vadd.f32 %v1023, %v1219
        %v1284 = vadd.f32 %v1025, %v1220
        %v1285 = vadd.f32 %v914, %v1221
        %v1286 = vadd.f32 %v916, %v1222
        %v1287 = vadd.f32 %v1027, %v1223
        %v1288 = vadd.f32 %v1029, %v1224
        %v1289 = vadd.f32 %v920, %v1225
        %v1290 = vadd.f32 %v922, %v1226
        %v1291 = vadd.f32 %v1033, %v1227
        %v1292 = vadd.f32 %v1035, %v1228
        %v1293 = vadd.f32 %v924, %v1229
        %v1294 = vadd.f32 %v926, %v1230
        %v1295 = vadd.f32 %v1037, %v1231
        %v1296 = vadd.f32 %v1039, %v1232
        %v1297 = vmul.f32 %v1233, 0.7978846
        %v1298 = vmul.f32 %v1234, 0.7978846
        %v1299 = vmul.f32 %v1235, 0.7978846
        %v1300 = vmul.f32 %v1236, 0.7978846
        %v1301 = vmul.f32 %v1237, 0.7978846
        %v1302 = vmul.f32 %v1238, 0.7978846
        %v1303 = vmul.f32 %v1239, 0.7978846
        %v1304 = vmul.f32 %v1240, 0.7978846
        %v1305 = vmul.f32 %v1241, 0.7978846
        %v1306 = vmul.f32 %v1242, 0.7978846
        %v1307 = vmul.f32 %v1243, 0.7978846
        %v1308 = vmul.f32 %v1244, 0.7978846
        %v1309 = vmul.f32 %v1245, 0.7978846
        %v1310 = vmul.f32 %v1246, 0.7978846
        %v1311 = vmul.f32 %v1247, 0.7978846
        %v1312 = vmul.f32 %v1248, 0.7978846
        %v1313 = vmul.f32 %v1249, 0.7978846
        %v1314 = vmul.f32 %v1250, 0.7978846
        %v1315 = vmul.f32 %v1251, 0.7978846
        %v1316 = vmul.f32 %v1252, 0.7978846
        %v1317 = vmul.f32 %v1253, 0.7978846
        %v1318 = vmul.f32 %v1254, 0.7978846
        %v1319 = vmul.f32 %v1255, 0.7978846
        %v1320 = vmul.f32 %v1256, 0.7978846
        %v1321 = vmul.f32 %v1257, 0.7978846
        %v1322 = vmul.f32 %v1258, 0.7978846
        %v1323 = vmul.f32 %v1259, 0.7978846
        %v1324 = vmul.f32 %v1260, 0.7978846
        %v1325 = vmul.f32 %v1261, 0.7978846
        %v1326 = vmul.f32 %v1262, 0.7978846
        %v1327 = vmul.f32 %v1263, 0.7978846
        %v1328 = vmul.f32 %v1264, 0.7978846
        %v1329 = vmul.f32 %v1265, 0.7978846
        %v1330 = vmul.f32 %v1266, 0.7978846
        %v1331 = vmul.f32 %v1267, 0.7978846
        %v1332 = vmul.f32 %v1268, 0.7978846
        %v1333 = vmul.f32 %v1269, 0.7978846
        %v1334 = vmul.f32 %v1270, 0.7978846
        %v1335 = vmul.f32 %v1271, 0.7978846
        %v1336 = vmul.f32 %v1272, 0.7978846
        %v1337 = vmul.f32 %v1273, 0.7978846
        %v1338 = vmul.f32 %v1274, 0.7978846
        %v1339 = vmul.f32 %v1275, 0.7978846
        %v1340 = vmul.f32 %v1276, 0.7978846
        %v1341 = vmul.f32 %v1277, 0.7978846
        %v1342 = vmul.f32 %v1278, 0.7978846
        %v1343 = vmul.f32 %v1279, 0.7978846
        %v1344 = vmul.f32 %v1280, 0.7978846
        %v1345 = vmul.f32 %v1281, 0.7978846
        %v1346 = vmul.f32 %v1282, 0.7978846
        %v1347 = vmul.f32 %v1283, 0.7978846
        %v1348 = vmul.f32 %v1284, 0.7978846
        %v1349 = vmul.f32 %v1285, 0.7978846
        %v1350 = vmul.f32 %v1286, 0.7978846
        %v1351 = vmul.f32 %v1287, 0.7978846
        %v1352 = vmul.f32 %v1288, 0.7978846
        %v1353 = vmul.f32 %v1289, 0.7978846
        %v1354 = vmul.f32 %v1290, 0.7978846
        %v1355 = vmul.f32 %v1291, 0.7978846
        %v1356 = vmul.f32 %v1292, 0.7978846
        %v1357 = vmul.f32 %v1293, 0.7978846
        %v1358 = vmul.f32 %v1294, 0.7978846
        %v1359 = vmul.f32 %v1295, 0.7978846
        %v1360 = vmul.f32 %v1296, 0.7978846
        %v1361 = vmul.f32 %v850, 0.5
        %v1362 = vmul.f32 %v852, 0.5
        %v1363 = vmul.f32 %v963, 0.5
        %v1364 = vmul.f32 %v965, 0.5
        %v1365 = vmul.f32 %v854, 0.5
        %v1366 = vmul.f32 %v856, 0.5
        %v1367 = vmul.f32 %v967, 0.5
        %v1368 = vmul.f32 %v969, 0.5
        %v1369 = vmul.f32 %v860, 0.5
        %v1370 = vmul.f32 %v862, 0.5
        %v1371 = vmul.f32 %v973, 0.5
        %v1372 = vmul.f32 %v975, 0.5
        %v1373 = vmul.f32 %v864, 0.5
        %v1374 = vmul.f32 %v866, 0.5
        %v1375 = vmul.f32 %v977, 0.5
        %v1376 = vmul.f32 %v979, 0.5
        %v1377 = vmul.f32 %v870, 0.5
        %v1378 = vmul.f32 %v872, 0.5
        %v1379 = vmul.f32 %v983, 0.5
        %v1380 = vmul.f32 %v985, 0.5
        %v1381 = vmul.f32 %v874, 0.5
        %v1382 = vmul.f32 %v876, 0.5
        %v1383 = vmul.f32 %v987, 0.5
        %v1384 = vmul.f32 %v989, 0.5
        %v1385 = vmul.f32 %v880, 0.5
        %v1386 = vmul.f32 %v882, 0.5
        %v1387 = vmul.f32 %v993, 0.5
        %v1388 = vmul.f32 %v995, 0.5
        %v1389 = vmul.f32 %v884, 0.5
        %v1390 = vmul.f32 %v886, 0.5
        %v1391 = vmul.f32 %v997, 0.5
        %v1392 = vmul.f32 %v999, 0.5
        %v1393 = vmul.f32 %v890, 0.5
        %v1394 = vmul.f32 %v892, 0.5
        %v1395 = vmul.f32 %v1003, 0.5
        %v1396 = vmul.f32 %v1005, 0.5
        %v1397 = vmul.f32 %v894, 0.5
        %v1398 = vmul.f32 %v896, 0.5
        %v1399 = vmul.f32 %v1007, 0.5
        %v1400 = vmul.f32 %v1009, 0.5
        %v1401 = vmul.f32 %v900, 0.5
        %v1402 = vmul.f32 %v902, 0.5
        %v1403 = vmul.f32 %v1013, 0.5
        %v1404 = vmul.f32 %v1015, 0.5
        %v1405 = vmul.f32 %v904, 0.5
        %v1406 = vmul.f32 %v906, 0.5
        %v1407 = vmul.f32 %v1017, 0.5
        %v1408 = vmul.f32 %v1019, 0.5
        %v1409 = vmul.f32 %v910, 0.5
        %v1410 = vmul.f32 %v912, 0.5
        %v1411 = vmul.f32 %v1023, 0.5
        %v1412 = vmul.f32 %v1025, 0.5
        %v1413 = vmul.f32 %v914, 0.5
        %v1414 = vmul.f32 %v916, 0.5
        %v1415 = vmul.f32 %v1027, 0.5
        %v1416 = vmul.f32 %v1029, 0.5
        %v1417 = vmul.f32 %v920, 0.5
        %v1418 = vmul.f32 %v922, 0.5
        %v1419 = vmul.f32 %v1033, 0.5
        %v1420 = vmul.f32 %v1035, 0.5
        %v1421 = vmul.f32 %v924, 0.5
        %v1422 = vmul.f32 %v926, 0.5
        %v1423 = vmul.f32 %v1037, 0.5
        %v1424 = vmul.f32 %v1039, 0.5
        %v1425 = vtanh.pop %v1297
        %v1426 = vtanh.pop %v1298
        %v1427 = vtanh.pop %v1299
        %v1428 = vtanh.pop %v1300
        %v1429 = vtanh.pop %v1301
        %v1430 = vtanh.pop %v1302
        %v1431 = vtanh.pop %v1303
        %v1432 = vtanh.pop %v1304
        %v1433 = vtanh.pop %v1305
        %v1434 = vtanh.pop %v1306
        %v1435 = vtanh.pop %v1307
        %v1436 = vtanh.pop %v1308
        %v1437 = vtanh.pop %v1309
        %v1438 = vtanh.pop %v1310
        %v1439 = vtanh.pop %v1311
        %v1440 = vtanh.pop %v1312
        %v1441 = vtanh.pop %v1313
        %v1442 = vtanh.pop %v1314
        %v1443 = vtanh.pop %v1315
        %v1444 = vtanh.pop %v1316
        %v1445 = vtanh.pop %v1317
        %v1446 = vtanh.pop %v1318
        %v1447 = vtanh.pop %v1319
        %v1448 = vtanh.pop %v1320
        %v1449 = vtanh.pop %v1321
        %v1450 = vtanh.pop %v1322
        %v1451 = vtanh.pop %v1323
        %v1452 = vtanh.pop %v1324
        %v1453 = vtanh.pop %v1325
        %v1454 = vtanh.pop %v1326
        %v1455 = vtanh.pop %v1327
        %v1456 = vtanh.pop %v1328
        %v1457 = vtanh.pop %v1329
        %v1458 = vtanh.pop %v1330
        %v1459 = vtanh.pop %v1331
        %v1460 = vtanh.pop %v1332
        %v1461 = vtanh.pop %v1333
        %v1462 = vtanh.pop %v1334
        %v1463 = vtanh.pop %v1335
        %v1464 = vtanh.pop %v1336
        %v1465 = vtanh.pop %v1337
        %v1466 = vtanh.pop %v1338
        %v1467 = vtanh.pop %v1339
        %v1468 = vtanh.pop %v1340
        %v1469 = vtanh.pop %v1341
        %v1470 = vtanh.pop %v1342
        %v1471 = vtanh.pop %v1343
        %v1472 = vtanh.pop %v1344
        %v1473 = vtanh.pop %v1345
        %v1474 = vtanh.pop %v1346
        %v1475 = vtanh.pop %v1347
        %v1476 = vtanh.pop %v1348
        %v1477 = vtanh.pop %v1349
        %v1478 = vtanh.pop %v1350
        %v1479 = vtanh.pop %v1351
        %v1480 = vtanh.pop %v1352
        %v1481 = vtanh.pop %v1353
        %v1482 = vtanh.pop %v1354
        %v1483 = vtanh.pop %v1355
        %v1484 = vtanh.pop %v1356
        %v1485 = vtanh.pop %v1357
        %v1486 = vtanh.pop %v1358
        %v1487 = vtanh.pop %v1359
        %v1488 = vtanh.pop %v1360
        %v1489 = vadd.f32 %v1425, 1.0
        %v1490 = vadd.f32 %v1426, 1.0
        %v1491 = vadd.f32 %v1427, 1.0
        %v1492 = vadd.f32 %v1428, 1.0
        %v1493 = vadd.f32 %v1429, 1.0
        %v1494 = vadd.f32 %v1430, 1.0
        %v1495 = vadd.f32 %v1431, 1.0
        %v1496 = vadd.f32 %v1432, 1.0
        %v1497 = vadd.f32 %v1433, 1.0
        %v1498 = vadd.f32 %v1434, 1.0
        %v1499 = vadd.f32 %v1435, 1.0
        %v1500 = vadd.f32 %v1436, 1.0
        %v1501 = vadd.f32 %v1437, 1.0
        %v1502 = vadd.f32 %v1438, 1.0
        %v1503 = vadd.f32 %v1439, 1.0
        %v1504 = vadd.f32 %v1440, 1.0
        %v1505 = vadd.f32 %v1441, 1.0
        %v1506 = vadd.f32 %v1442, 1.0
        %v1507 = vadd.f32 %v1443, 1.0
        %v1508 = vadd.f32 %v1444, 1.0
        %v1509 = vadd.f32 %v1445, 1.0
        %v1510 = vadd.f32 %v1446, 1.0
        %v1511 = vadd.f32 %v1447, 1.0
        %v1512 = vadd.f32 %v1448, 1.0
        %v1513 = vadd.f32 %v1449, 1.0
        %v1514 = vadd.f32 %v1450, 1.0
        %v1515 = vadd.f32 %v1451, 1.0
        %v1516 = vadd.f32 %v1452, 1.0
        %v1517 = vadd.f32 %v1453, 1.0
        %v1518 = vadd.f32 %v1454, 1.0
        %v1519 = vadd.f32 %v1455, 1.0
        %v1520 = vadd.f32 %v1456, 1.0
        %v1521 = vadd.f32 %v1457, 1.0
        %v1522 = vadd.f32 %v1458, 1.0
        %v1523 = vadd.f32 %v1459, 1.0
        %v1524 = vadd.f32 %v1460, 1.0
        %v1525 = vadd.f32 %v1461, 1.0
        %v1526 = vadd.f32 %v1462, 1.0
        %v1527 = vadd.f32 %v1463, 1.0
        %v1528 = vadd.f32 %v1464, 1.0
        %v1529 = vadd.f32 %v1465, 1.0
        %v1530 = vadd.f32 %v1466, 1.0
        %v1531 = vadd.f32 %v1467, 1.0
        %v1532 = vadd.f32 %v1468, 1.0
        %v1533 = vadd.f32 %v1469, 1.0
        %v1534 = vadd.f32 %v1470, 1.0
        %v1535 = vadd.f32 %v1471, 1.0
        %v1536 = vadd.f32 %v1472, 1.0
        %v1537 = vadd.f32 %v1473, 1.0
        %v1538 = vadd.f32 %v1474, 1.0
        %v1539 = vadd.f32 %v1475, 1.0
        %v1540 = vadd.f32 %v1476, 1.0
        %v1541 = vadd.f32 %v1477, 1.0
        %v1542 = vadd.f32 %v1478, 1.0
        %v1543 = vadd.f32 %v1479, 1.0
        %v1544 = vadd.f32 %v1480, 1.0
        %v1545 = vadd.f32 %v1481, 1.0
        %v1546 = vadd.f32 %v1482, 1.0
        %v1547 = vadd.f32 %v1483, 1.0
        %v1548 = vadd.f32 %v1484, 1.0
        %v1549 = vadd.f32 %v1485, 1.0
        %v1550 = vadd.f32 %v1486, 1.0
        %v1551 = vadd.f32 %v1487, 1.0
        %v1552 = vadd.f32 %v1488, 1.0
        %v1553 = vmul.f32 %v1361, %v1489
        %v1554 = vmul.f32 %v1362, %v1490
        %v1555 = vmul.f32 %v1363, %v1491
        %v1556 = vmul.f32 %v1364, %v1492
        %v1557 = vmul.f32 %v1365, %v1493
        %v1558 = vmul.f32 %v1366, %v1494
        %v1559 = vmul.f32 %v1367, %v1495
        %v1560 = vmul.f32 %v1368, %v1496
        %v1561 = vmul.f32 %v1369, %v1497
        %v1562 = vmul.f32 %v1370, %v1498
        %v1563 = vmul.f32 %v1371, %v1499
        %v1564 = vmul.f32 %v1372, %v1500
        %v1565 = vmul.f32 %v1373, %v1501
        %v1566 = vmul.f32 %v1374, %v1502
        %v1567 = vmul.f32 %v1375, %v1503
        %v1568 = vmul.f32 %v1376, %v1504
        %v1569 = vmul.f32 %v1377, %v1505
        %v1570 = vmul.f32 %v1378, %v1506
        %v1571 = vmul.f32 %v1379, %v1507
        %v1572 = vmul.f32 %v1380, %v1508
        %v1573 = vmul.f32 %v1381, %v1509
        %v1574 = vmul.f32 %v1382, %v1510
        %v1575 = vmul.f32 %v1383, %v1511
        %v1576 = vmul.f32 %v1384, %v1512
        %v1577 = vmul.f32 %v1385, %v1513
        %v1578 = vmul.f32 %v1386, %v1514
        %v1579 = vmul.f32 %v1387, %v1515
        %v1580 = vmul.f32 %v1388, %v1516
        %v1581 = vmul.f32 %v1389, %v1517
        %v1582 = vmul.f32 %v1390, %v1518
        %v1583 = vmul.f32 %v1391, %v1519
        %v1584 = vmul.f32 %v1392, %v1520
        %v1585 = vmul.f32 %v1393, %v1521
        %v1586 = vmul.f32 %v1394, %v1522
        %v1587 = vmul.f32 %v1395, %v1523
        %v1588 = vmul.f32 %v1396, %v1524
        %v1589 = vmul.f32 %v1397, %v1525
        %v1590 = vmul.f32 %v1398, %v1526
        %v1591 = vmul.f32 %v1399, %v1527
        %v1592 = vmul.f32 %v1400, %v1528
        %v1593 = vmul.f32 %v1401, %v1529
        %v1594 = vmul.f32 %v1402, %v1530
        %v1595 = vmul.f32 %v1403, %v1531
        %v1596 = vmul.f32 %v1404, %v1532
        %v1597 = vmul.f32 %v1405, %v1533
        %v1598 = vmul.f32 %v1406, %v1534
        %v1599 = vmul.f32 %v1407, %v1535
        %v1600 = vmul.f32 %v1408, %v1536
        %v1601 = vmul.f32 %v1409, %v1537
        %v1602 = vmul.f32 %v1410, %v1538
        %v1603 = vmul.f32 %v1411, %v1539
        %v1604 = vmul.f32 %v1412, %v1540
        %v1605 = vmul.f32 %v1413, %v1541
        %v1606 = vmul.f32 %v1414, %v1542
        %v1607 = vmul.f32 %v1415, %v1543
        %v1608 = vmul.f32 %v1416, %v1544
        %v1609 = vmul.f32 %v1417, %v1545
        %v1610 = vmul.f32 %v1418, %v1546
        %v1611 = vmul.f32 %v1419, %v1547
        %v1612 = vmul.f32 %v1420, %v1548
        %v1613 = vmul.f32 %v1421, %v1549
        %v1614 = vmul.f32 %v1422, %v1550
        %v1615 = vmul.f32 %v1423, %v1551
        %v1616 = vmul.f32 %v1424, %v1552
        %v1617 = vld [vmem:[%s315] sm:$0xff]
        %v1618 = vld [vmem:[%s315 + $0x8] sm:$0xff]
        %v1619 = vld [vmem:[%s315 + $0x10] sm:$0xff]
        %v1620 = vld [vmem:[%s315 + $0x18] sm:$0xff]
        %v1621 = vld [vmem:[%s315 + $0x20] sm:$0xff]
        %v1622 = vld [vmem:[%s315 + $0x28] sm:$0xff]
        %v1623 = vld [vmem:[%s315 + $0x30] sm:$0xff]
        %v1624 = vld [vmem:[%s315 + $0x38] sm:$0xff]
        %v1625 = vld [vmem:[%s315 + $0x40] sm:$0xff]
        %v1626 = vld [vmem:[%s315 + $0x48] sm:$0xff]
        %v1627 = vld [vmem:[%s315 + $0x50] sm:$0xff]
        %v1628 = vld [vmem:[%s315 + $0x58] sm:$0xff]
        %v1629 = vld [vmem:[%s315 + $0x60] sm:$0xff]
        %v1630 = vld [vmem:[%s315 + $0x68] sm:$0xff]
        %v1631 = vld [vmem:[%s315 + $0x70] sm:$0xff]
        %v1632 = vld [vmem:[%s315 + $0x78] sm:$0xff]
        %v1633 = vld [vmem:[%s315 + $0x80] sm:$0xff]
        %v1634 = vld [vmem:[%s315 + $0x88] sm:$0xff]
        %v1635 = vld [vmem:[%s315 + $0x90] sm:$0xff]
        %v1636 = vld [vmem:[%s315 + $0x98] sm:$0xff]
        %v1637 = vld [vmem:[%s315 + $0xa0] sm:$0xff]
        %v1638 = vld [vmem:[%s315 + $0xa8] sm:$0xff]
        %v1639 = vld [vmem:[%s315 + $0xb0] sm:$0xff]
        %v1640 = vld [vmem:[%s315 + $0xb8] sm:$0xff]
        %v1641 = vld [vmem:[%s315 + $0xc0] sm:$0xff]
        %v1642 = vld [vmem:[%s315 + $0xc8] sm:$0xff]
        %v1643 = vld [vmem:[%s315 + $0xd0] sm:$0xff]
        %v1644 = vld [vmem:[%s315 + $0xd8] sm:$0xff]
        %v1645 = vld [vmem:[%s315 + $0xe0] sm:$0xff]
        %v1646 = vld [vmem:[%s315 + $0xe8] sm:$0xff]
        %v1647 = vld [vmem:[%s315 + $0xf0] sm:$0xff]
        %v1648 = vld [vmem:[%s315 + $0xf8] sm:$0xff]
        %v1649 = vpack.c.bf16 %v1557, %v1553
        %v1650 = vpack.c.bf16 %v1558, %v1554
        %v1651 = vpack.c.bf16 %v1559, %v1555
        %v1652 = vpack.c.bf16 %v1560, %v1556
        %v1653 = vpack.c.bf16 %v1565, %v1561
        %v1654 = vpack.c.bf16 %v1566, %v1562
        %v1655 = vpack.c.bf16 %v1567, %v1563
        %v1656 = vpack.c.bf16 %v1568, %v1564
        %v1657 = vpack.c.bf16 %v1573, %v1569
        %v1658 = vpack.c.bf16 %v1574, %v1570
        %v1659 = vpack.c.bf16 %v1575, %v1571
        %v1660 = vpack.c.bf16 %v1576, %v1572
        %v1661 = vpack.c.bf16 %v1581, %v1577
        %v1662 = vpack.c.bf16 %v1582, %v1578
        %v1663 = vpack.c.bf16 %v1583, %v1579
        %v1664 = vpack.c.bf16 %v1584, %v1580
        %v1665 = vpack.c.bf16 %v1589, %v1585
        %v1666 = vpack.c.bf16 %v1590, %v1586
        %v1667 = vpack.c.bf16 %v1591, %v1587
        %v1668 = vpack.c.bf16 %v1592, %v1588
        %v1669 = vpack.c.bf16 %v1597, %v1593
        %v1670 = vpack.c.bf16 %v1598, %v1594
        %v1671 = vpack.c.bf16 %v1599, %v1595
        %v1672 = vpack.c.bf16 %v1600, %v1596
        %v1673 = vpack.c.bf16 %v1605, %v1601
        %v1674 = vpack.c.bf16 %v1606, %v1602
        %v1675 = vpack.c.bf16 %v1607, %v1603
        %v1676 = vpack.c.bf16 %v1608, %v1604
        %v1677 = vpack.c.bf16 %v1613, %v1609
        %v1678 = vpack.c.bf16 %v1614, %v1610
        %v1679 = vpack.c.bf16 %v1615, %v1611
        %v1680 = vpack.c.bf16 %v1616, %v1612
        %v1681 = vld [vmem:[#allocation7] sm:$0xff]
        %v1682 = vld [vmem:[#allocation7 + $0x8] sm:$0xff]
        %v1683 = vld [vmem:[#allocation7 + $0x10] sm:$0xff]
        %v1684 = vld [vmem:[#allocation7 + $0x18] sm:$0xff]
        %v1685 = vld [vmem:[#allocation7 + $0x20] sm:$0xff]
        %v1686 = vld [vmem:[#allocation7 + $0x28] sm:$0xff]
        %v1687 = vld [vmem:[#allocation7 + $0x30] sm:$0xff]
        %v1688 = vld [vmem:[#allocation7 + $0x38] sm:$0xff]
        %v1689 = vld [vmem:[#allocation7 + $0x40] sm:$0xff]
        %v1690 = vld [vmem:[#allocation7 + $0x48] sm:$0xff]
        %v1691 = vld [vmem:[#allocation7 + $0x50] sm:$0xff]
        %v1692 = vld [vmem:[#allocation7 + $0x58] sm:$0xff]
        %v1693 = vld [vmem:[#allocation7 + $0x60] sm:$0xff]
        %v1694 = vld [vmem:[#allocation7 + $0x68] sm:$0xff]
        %v1695 = vld [vmem:[#allocation7 + $0x70] sm:$0xff]
        %v1696 = vld [vmem:[#allocation7 + $0x78] sm:$0xff]
        %v1697 = vld [vmem:[#allocation7 + $0x80] sm:$0xff]
        %v1698 = vld [vmem:[#allocation7 + $0x88] sm:$0xff]
        %v1699 = vld [vmem:[#allocation7 + $0x90] sm:$0xff]
        %v1700 = vld [vmem:[#allocation7 + $0x98] sm:$0xff]
        %v1701 = vld [vmem:[#allocation7 + $0xa0] sm:$0xff]
        %v1702 = vld [vmem:[#allocation7 + $0xa8] sm:$0xff]
        %v1703 = vld [vmem:[#allocation7 + $0xb0] sm:$0xff]
        %v1704 = vld [vmem:[#allocation7 + $0xb8] sm:$0xff]
        %v1705 = vld [vmem:[#allocation7 + $0xc0] sm:$0xff]
        %v1706 = vld [vmem:[#allocation7 + $0xc8] sm:$0xff]
        %v1707 = vld [vmem:[#allocation7 + $0xd0] sm:$0xff]
        %v1708 = vld [vmem:[#allocation7 + $0xd8] sm:$0xff]
        %v1709 = vld [vmem:[#allocation7 + $0xe0] sm:$0xff]
        %v1710 = vld [vmem:[#allocation7 + $0xe8] sm:$0xff]
        %v1711 = vld [vmem:[#allocation7 + $0xf0] sm:$0xff]
        %v1712 = vld [vmem:[#allocation7 + $0xf8] sm:$0xff]
        %v1713 = vld [vmem:[#allocation7 + $0x100] sm:$0xff]
        %v1714 = vld [vmem:[#allocation7 + $0x108] sm:$0xff]
        %v1715 = vld [vmem:[#allocation7 + $0x110] sm:$0xff]
        %v1716 = vld [vmem:[#allocation7 + $0x118] sm:$0xff]
        %v1717 = vld [vmem:[#allocation7 + $0x120] sm:$0xff]
        %v1718 = vld [vmem:[#allocation7 + $0x128] sm:$0xff]
        %v1719 = vld [vmem:[#allocation7 + $0x130] sm:$0xff]
        %v1720 = vld [vmem:[#allocation7 + $0x138] sm:$0xff]
        %v1721 = vld [vmem:[#allocation7 + $0x140] sm:$0xff]
        %v1722 = vld [vmem:[#allocation7 + $0x148] sm:$0xff]
        %v1723 = vld [vmem:[#allocation7 + $0x150] sm:$0xff]
        %v1724 = vld [vmem:[#allocation7 + $0x158] sm:$0xff]
        %v1725 = vld [vmem:[#allocation7 + $0x160] sm:$0xff]
        %v1726 = vld [vmem:[#allocation7 + $0x168] sm:$0xff]
        %v1727 = vld [vmem:[#allocation7 + $0x170] sm:$0xff]
        %v1728 = vld [vmem:[#allocation7 + $0x178] sm:$0xff]
        %v1729 = vld [vmem:[#allocation7 + $0x180] sm:$0xff]
        %v1730 = vld [vmem:[#allocation7 + $0x188] sm:$0xff]
        %v1731 = vld [vmem:[#allocation7 + $0x190] sm:$0xff]
        %v1732 = vld [vmem:[#allocation7 + $0x198] sm:$0xff]
        %v1733 = vld [vmem:[#allocation7 + $0x1a0] sm:$0xff]
        %v1734 = vld [vmem:[#allocation7 + $0x1a8] sm:$0xff]
        %v1735 = vld [vmem:[#allocation7 + $0x1b0] sm:$0xff]
        %v1736 = vld [vmem:[#allocation7 + $0x1b8] sm:$0xff]
        %v1737 = vld [vmem:[#allocation7 + $0x1c0] sm:$0xff]
        %v1738 = vld [vmem:[#allocation7 + $0x1c8] sm:$0xff]
        %v1739 = vld [vmem:[#allocation7 + $0x1d0] sm:$0xff]
        %v1740 = vld [vmem:[#allocation7 + $0x1d8] sm:$0xff]
        %v1741 = vld [vmem:[#allocation7 + $0x1e0] sm:$0xff]
        %v1742 = vld [vmem:[#allocation7 + $0x1e8] sm:$0xff]
        %v1743 = vld [vmem:[#allocation7 + $0x1f0] sm:$0xff]
        %v1744 = vld [vmem:[#allocation7 + $0x1f8] sm:$0xff]
        %v1809 = vunpack.c.l.b16 %v1681
        %v1810 = vunpack.c.h.b16 %v1681
        %v1811 = vunpack.c.l.b16 %v1682
        %v1812 = vunpack.c.h.b16 %v1682
        %v1813 = vunpack.c.l.b16 %v1683
        %v1814 = vunpack.c.h.b16 %v1683
        %v1815 = vunpack.c.l.b16 %v1684
        %v1816 = vunpack.c.h.b16 %v1684
        %v1817 = vunpack.c.l.b16 %v1685
        %v1818 = vunpack.c.h.b16 %v1685
        %v1819 = vunpack.c.l.b16 %v1686
        %v1820 = vunpack.c.h.b16 %v1686
        %v1821 = vunpack.c.l.b16 %v1687
        %v1822 = vunpack.c.h.b16 %v1687
        %v1823 = vunpack.c.l.b16 %v1688
        %v1824 = vunpack.c.h.b16 %v1688
        %v1825 = vunpack.c.l.b16 %v1689
        %v1826 = vunpack.c.h.b16 %v1689
        %v1827 = vunpack.c.l.b16 %v1690
        %v1828 = vunpack.c.h.b16 %v1690
        %v1829 = vunpack.c.l.b16 %v1691
        %v1830 = vunpack.c.h.b16 %v1691
        %v1831 = vunpack.c.l.b16 %v1692
        %v1832 = vunpack.c.h.b16 %v1692
        %v1833 = vunpack.c.l.b16 %v1693
        %v1834 = vunpack.c.h.b16 %v1693
        %v1835 = vunpack.c.l.b16 %v1694
        %v1836 = vunpack.c.h.b16 %v1694
        %v1837 = vunpack.c.l.b16 %v1695
        %v1838 = vunpack.c.h.b16 %v1695
        %v1839 = vunpack.c.l.b16 %v1696
        %v1840 = vunpack.c.h.b16 %v1696
        %v1841 = vunpack.c.l.b16 %v1697
        %v1842 = vunpack.c.h.b16 %v1697
        %v1843 = vunpack.c.l.b16 %v1698
        %v1844 = vunpack.c.h.b16 %v1698
        %v1845 = vunpack.c.l.b16 %v1699
        %v1846 = vunpack.c.h.b16 %v1699
        %v1847 = vunpack.c.l.b16 %v1700
        %v1848 = vunpack.c.h.b16 %v1700
        %v1849 = vunpack.c.l.b16 %v1701
        %v1850 = vunpack.c.h.b16 %v1701
        %v1851 = vunpack.c.l.b16 %v1702
        %v1852 = vunpack.c.h.b16 %v1702
        %v1853 = vunpack.c.l.b16 %v1703
        %v1854 = vunpack.c.h.b16 %v1703
        %v1855 = vunpack.c.l.b16 %v1704
        %v1856 = vunpack.c.h.b16 %v1704
        %v1857 = vunpack.c.l.b16 %v1705
        %v1858 = vunpack.c.h.b16 %v1705
        %v1859 = vunpack.c.l.b16 %v1706
        %v1860 = vunpack.c.h.b16 %v1706
        %v1861 = vunpack.c.l.b16 %v1707
        %v1862 = vunpack.c.h.b16 %v1707
        %v1863 = vunpack.c.l.b16 %v1708
        %v1864 = vunpack.c.h.b16 %v1708
        %v1865 = vunpack.c.l.b16 %v1709
        %v1866 = vunpack.c.h.b16 %v1709
        %v1867 = vunpack.c.l.b16 %v1710
        %v1868 = vunpack.c.h.b16 %v1710
        %v1869 = vunpack.c.l.b16 %v1711
        %v1870 = vunpack.c.h.b16 %v1711
        %v1871 = vunpack.c.l.b16 %v1712
        %v1872 = vunpack.c.h.b16 %v1712
        %v1873 = vunpack.c.l.b16 %v1713
        %v1874 = vunpack.c.h.b16 %v1713
        %v1875 = vunpack.c.l.b16 %v1714
        %v1876 = vunpack.c.h.b16 %v1714
        %v1877 = vunpack.c.l.b16 %v1715
        %v1878 = vunpack.c.h.b16 %v1715
        %v1879 = vunpack.c.l.b16 %v1716
        %v1880 = vunpack.c.h.b16 %v1716
        %v1881 = vunpack.c.l.b16 %v1717
        %v1882 = vunpack.c.h.b16 %v1717
        %v1883 = vunpack.c.l.b16 %v1718
        %v1884 = vunpack.c.h.b16 %v1718
        %v1885 = vunpack.c.l.b16 %v1719
        %v1886 = vunpack.c.h.b16 %v1719
        %v1887 = vunpack.c.l.b16 %v1720
        %v1888 = vunpack.c.h.b16 %v1720
        %v1889 = vunpack.c.l.b16 %v1721
        %v1890 = vunpack.c.h.b16 %v1721
        %v1891 = vunpack.c.l.b16 %v1722
        %v1892 = vunpack.c.h.b16 %v1722
        %v1893 = vunpack.c.l.b16 %v1723
        %v1894 = vunpack.c.h.b16 %v1723
        %v1895 = vunpack.c.l.b16 %v1724
        %v1896 = vunpack.c.h.b16 %v1724
        %v1897 = vunpack.c.l.b16 %v1725
        %v1898 = vunpack.c.h.b16 %v1725
        %v1899 = vunpack.c.l.b16 %v1726
        %v1900 = vunpack.c.h.b16 %v1726
        %v1901 = vunpack.c.l.b16 %v1727
        %v1902 = vunpack.c.h.b16 %v1727
        %v1903 = vunpack.c.l.b16 %v1728
        %v1904 = vunpack.c.h.b16 %v1728
        %v1905 = vunpack.c.l.b16 %v1729
        %v1906 = vunpack.c.h.b16 %v1729
        %v1907 = vunpack.c.l.b16 %v1730
        %v1908 = vunpack.c.h.b16 %v1730
        %v1909 = vunpack.c.l.b16 %v1731
        %v1910 = vunpack.c.h.b16 %v1731
        %v1911 = vunpack.c.l.b16 %v1732
        %v1912 = vunpack.c.h.b16 %v1732
        %v1913 = vunpack.c.l.b16 %v1733
        %v1914 = vunpack.c.h.b16 %v1733
        %v1915 = vunpack.c.l.b16 %v1734
        %v1916 = vunpack.c.h.b16 %v1734
        %v1917 = vunpack.c.l.b16 %v1735
        %v1918 = vunpack.c.h.b16 %v1735
        %v1919 = vunpack.c.l.b16 %v1736
        %v1920 = vunpack.c.h.b16 %v1736
        %v1921 = vunpack.c.l.b16 %v1737
        %v1922 = vunpack.c.h.b16 %v1737
        %v1923 = vunpack.c.l.b16 %v1738
        %v1924 = vunpack.c.h.b16 %v1738
        %v1925 = vunpack.c.l.b16 %v1739
        %v1926 = vunpack.c.h.b16 %v1739
        %v1927 = vunpack.c.l.b16 %v1740
        %v1928 = vunpack.c.h.b16 %v1740
        %v1929 = vunpack.c.l.b16 %v1741
        %v1930 = vunpack.c.h.b16 %v1741
        %v1931 = vunpack.c.l.b16 %v1742
        %v1932 = vunpack.c.h.b16 %v1742
        %v1933 = vunpack.c.l.b16 %v1743
        %v1934 = vunpack.c.h.b16 %v1743
        %v1935 = vunpack.c.l.b16 %v1744
        %v1936 = vunpack.c.h.b16 %v1744
        %v1937 = vpack.c.b16 %v1811, %v1809
        %v1938 = vpack.c.b16 %v1812, %v1810
        %v1939 = vpack.c.b16 %v1815, %v1813
        %v1940 = vpack.c.b16 %v1816, %v1814
        %v1941 = vpack.c.b16 %v1819, %v1817
        %v1942 = vpack.c.b16 %v1820, %v1818
        %v1943 = vpack.c.b16 %v1823, %v1821
        %v1944 = vpack.c.b16 %v1824, %v1822
        %v1945 = vpack.c.b16 %v1827, %v1825
        %v1946 = vpack.c.b16 %v1828, %v1826
        %v1947 = vpack.c.b16 %v1831, %v1829
        %v1948 = vpack.c.b16 %v1832, %v1830
        %v1949 = vpack.c.b16 %v1835, %v1833
        %v1950 = vpack.c.b16 %v1836, %v1834
        %v1951 = vpack.c.b16 %v1839, %v1837
        %v1952 = vpack.c.b16 %v1840, %v1838
        %v1953 = vpack.c.b16 %v1843, %v1841
        %v1954 = vpack.c.b16 %v1844, %v1842
        %v1955 = vpack.c.b16 %v1847, %v1845
        %v1956 = vpack.c.b16 %v1848, %v1846
        %v1957 = vpack.c.b16 %v1851, %v1849
        %v1958 = vpack.c.b16 %v1852, %v1850
        %v1959 = vpack.c.b16 %v1855, %v1853
        %v1960 = vpack.c.b16 %v1856, %v1854
        %v1961 = vpack.c.b16 %v1859, %v1857
        %v1962 = vpack.c.b16 %v1860, %v1858
        %v1963 = vpack.c.b16 %v1863, %v1861
        %v1964 = vpack.c.b16 %v1864, %v1862
        %v1965 = vpack.c.b16 %v1867, %v1865
        %v1966 = vpack.c.b16 %v1868, %v1866
        %v1967 = vpack.c.b16 %v1871, %v1869
        %v1968 = vpack.c.b16 %v1872, %v1870
        %v1969 = vpack.c.b16 %v1875, %v1873
        %v1970 = vpack.c.b16 %v1876, %v1874
        %v1971 = vpack.c.b16 %v1879, %v1877
        %v1972 = vpack.c.b16 %v1880, %v1878
        %v1973 = vpack.c.b16 %v1883, %v1881
        %v1974 = vpack.c.b16 %v1884, %v1882
        %v1975 = vpack.c.b16 %v1887, %v1885
        %v1976 = vpack.c.b16 %v1888, %v1886
        %v1977 = vpack.c.b16 %v1891, %v1889
        %v1978 = vpack.c.b16 %v1892, %v1890
        %v1979 = vpack.c.b16 %v1895, %v1893
        %v1980 = vpack.c.b16 %v1896, %v1894
        %v1981 = vpack.c.b16 %v1899, %v1897
        %v1982 = vpack.c.b16 %v1900, %v1898
        %v1983 = vpack.c.b16 %v1903, %v1901
        %v1984 = vpack.c.b16 %v1904, %v1902
        %v1985 = vpack.c.b16 %v1907, %v1905
        %v1986 = vpack.c.b16 %v1908, %v1906
        %v1987 = vpack.c.b16 %v1911, %v1909
        %v1988 = vpack.c.b16 %v1912, %v1910
        %v1989 = vpack.c.b16 %v1915, %v1913
        %v1990 = vpack.c.b16 %v1916, %v1914
        %v1991 = vpack.c.b16 %v1919, %v1917
        %v1992 = vpack.c.b16 %v1920, %v1918
        %v1993 = vpack.c.b16 %v1923, %v1921
        %v1994 = vpack.c.b16 %v1924, %v1922
        %v1995 = vpack.c.b16 %v1927, %v1925
        %v1996 = vpack.c.b16 %v1928, %v1926
        %v1997 = vpack.c.b16 %v1931, %v1929
        %v1998 = vpack.c.b16 %v1932, %v1930
        %v1999 = vpack.c.b16 %v1935, %v1933
        %v2000 = vpack.c.b16 %v1936, %v1934
        %2065 = vmatprep.subr.bf16.mxu0 %v1938
        %2066 = vmatpush1.bf16.msra.mxu0 %v1937
        %2067 = vmatprep.subr.bf16.mxu0 %v1940
        %2068 = vmatpush1.bf16.msra.mxu0 %v1939
        %2069 = vmatprep.subr.bf16.mxu0 %v1942
        %2070 = vmatpush1.bf16.msra.mxu0 %v1941
        %2071 = vmatprep.subr.bf16.mxu0 %v1944
        %2072 = vmatpush1.bf16.msra.mxu0 %v1943
        %2073 = vmatprep.subr.bf16.mxu0 %v1946
        %2074 = vmatpush1.bf16.msra.mxu0 %v1945
        %2075 = vmatprep.subr.bf16.mxu0 %v1948
        %2076 = vmatpush1.bf16.msra.mxu0 %v1947
        %2077 = vmatprep.subr.bf16.mxu0 %v1950
        %2078 = vmatpush1.bf16.msra.mxu0 %v1949
        %2079 = vmatprep.subr.bf16.mxu0 %v1952
        %2080 = vmatpush1.bf16.msra.mxu0 %v1951
        %2081 = vmatprep.subr.bf16.mxu0 %v1954
        %2082 = vmatpush1.bf16.msra.mxu0 %v1953
        %2083 = vmatprep.subr.bf16.mxu0 %v1956
        %2084 = vmatpush1.bf16.msra.mxu0 %v1955
        %2085 = vmatprep.subr.bf16.mxu0 %v1958
        %2086 = vmatpush1.bf16.msra.mxu0 %v1957
        %2087 = vmatprep.subr.bf16.mxu0 %v1960
        %2088 = vmatpush1.bf16.msra.mxu0 %v1959
        %2089 = vmatprep.subr.bf16.mxu0 %v1962
        %2090 = vmatpush1.bf16.msra.mxu0 %v1961
        %2091 = vmatprep.subr.bf16.mxu0 %v1964
        %2092 = vmatpush1.bf16.msra.mxu0 %v1963
        %2093 = vmatprep.subr.bf16.mxu0 %v1966
        %2094 = vmatpush1.bf16.msra.mxu0 %v1965
        %2095 = vmatprep.subr.bf16.mxu0 %v1968
        %2096 = vmatpush1.bf16.msra.mxu0 %v1967
        %2097 = vmatprep.mubr.bf16.mxu0 %v1650
        %2098 = vmatmul.mubr.bf16.gmra.mrb[0].mxu0 %v1649
        %v2099 = vpop.f32.mrb[0].mxu0
        %v2100 = vadd.f32 0.0, %v2099
        %v2101 = vpop.f32.mrb[0].mxu0
        %v2102 = vadd.f32 0.0, %v2101
        %v2103 = vpop.f32.mrb[0].mxu0
        %v2104 = vadd.f32 0.0, %v2103
        %v2105 = vpop.f32.mrb[0].mxu0
        %v2106 = vadd.f32 0.0, %v2105
        %2107 = vmatprep.mubr.bf16.mxu0 %v1654
        %2108 = vmatmul.mubr.bf16.gmra.mrb[0].mxu0 %v1653
        %v2109 = vpop.f32.mrb[0].mxu0
        %v2110 = vadd.f32 0.0, %v2109
        %v2111 = vpop.f32.mrb[0].mxu0
        %v2112 = vadd.f32 0.0, %v2111
        %v2113 = vpop.f32.mrb[0].mxu0
        %v2114 = vadd.f32 0.0, %v2113
        %v2115 = vpop.f32.mrb[0].mxu0
        %v2116 = vadd.f32 0.0, %v2115
        %2117 = vmatprep.mubr.bf16.mxu0 %v1658
        %2118 = vmatmul.mubr.bf16.gmra.mrb[0].mxu0 %v1657
        %v2119 = vpop.f32.mrb[0].mxu0
        %v2120 = vadd.f32 0.0, %v2119
        %v2121 = vpop.f32.mrb[0].mxu0
        %v2122 = vadd.f32 0.0, %v2121
        %v2123 = vpop.f32.mrb[0].mxu0
        %v2124 = vadd.f32 0.0, %v2123
        %v2125 = vpop.f32.mrb[0].mxu0
        %v2126 = vadd.f32 0.0, %v2125
        %2127 = vmatprep.mubr.bf16.mxu0 %v1662
        %2128 = vmatmul.mubr.bf16.gmra.mrb[0].mxu0 %v1661
        %v2129 = vpop.f32.mrb[0].mxu0
        %v2130 = vadd.f32 0.0, %v2129
        %v2131 = vpop.f32.mrb[0].mxu0
        %v2132 = vadd.f32 0.0, %v2131
        %v2133 = vpop.f32.mrb[0].mxu0
        %v2134 = vadd.f32 0.0, %v2133
        %v2135 = vpop.f32.mrb[0].mxu0
        %v2136 = vadd.f32 0.0, %v2135
        %2137 = vmatprep.mubr.bf16.mxu0 %v1666
        %2138 = vmatmul.mubr.bf16.gmra.mrb[0].mxu0 %v1665
        %v2139 = vpop.f32.mrb[0].mxu0
        %v2140 = vadd.f32 0.0, %v2139
        %v2141 = vpop.f32.mrb[0].mxu0
        %v2142 = vadd.f32 0.0, %v2141
        %v2143 = vpop.f32.mrb[0].mxu0
        %v2144 = vadd.f32 0.0, %v2143
        %v2145 = vpop.f32.mrb[0].mxu0
        %v2146 = vadd.f32 0.0, %v2145
        %2147 = vmatprep.mubr.bf16.mxu0 %v1670
        %2148 = vmatmul.mubr.bf16.gmra.mrb[0].mxu0 %v1669
        %v2149 = vpop.f32.mrb[0].mxu0
        %v2150 = vadd.f32 0.0, %v2149
        %v2151 = vpop.f32.mrb[0].mxu0
        %v2152 = vadd.f32 0.0, %v2151
        %v2153 = vpop.f32.mrb[0].mxu0
        %v2154 = vadd.f32 0.0, %v2153
        %v2155 = vpop.f32.mrb[0].mxu0
        %v2156 = vadd.f32 0.0, %v2155
        %2157 = vmatprep.mubr.bf16.mxu0 %v1674
        %2158 = vmatmul.mubr.bf16.gmra.mrb[0].mxu0 %v1673
        %v2159 = vpop.f32.mrb[0].mxu0
        %v2160 = vadd.f32 0.0, %v2159
        %v2161 = vpop.f32.mrb[0].mxu0
        %v2162 = vadd.f32 0.0, %v2161
        %v2163 = vpop.f32.mrb[0].mxu0
        %v2164 = vadd.f32 0.0, %v2163
        %v2165 = vpop.f32.mrb[0].mxu0
        %v2166 = vadd.f32 0.0, %v2165
        %2167 = vmatprep.mubr.bf16.mxu0 %v1678
        %2168 = vmatmul.mubr.bf16.gmra.mrb[0].mxu0 %v1677
        %v2169 = vpop.f32.mrb[0].mxu0
        %v2170 = vadd.f32 0.0, %v2169
        %v2171 = vpop.f32.mrb[0].mxu0
        %v2172 = vadd.f32 0.0, %v2171
        %v2173 = vpop.f32.mrb[0].mxu0
        %v2174 = vadd.f32 0.0, %v2173
        %v2175 = vpop.f32.mrb[0].mxu0
        %v2176 = vadd.f32 0.0, %v2175
        %2177 = vdwg.mxu0
        %2178 = vmatprep.subr.bf16.mxu0 %v1970
        %2179 = vmatpush1.bf16.msra.mxu0 %v1969
        %2180 = vmatprep.subr.bf16.mxu0 %v1972
        %2181 = vmatpush1.bf16.msra.mxu0 %v1971
        %2182 = vmatprep.subr.bf16.mxu0 %v1974
        %2183 = vmatpush1.bf16.msra.mxu0 %v1973
        %2184 = vmatprep.subr.bf16.mxu0 %v1976
        %2185 = vmatpush1.bf16.msra.mxu0 %v1975
        %2186 = vmatprep.subr.bf16.mxu0 %v1978
        %2187 = vmatpush1.bf16.msra.mxu0 %v1977
        %2188 = vmatprep.subr.bf16.mxu0 %v1980
        %2189 = vmatpush1.bf16.msra.mxu0 %v1979
        %2190 = vmatprep.subr.bf16.mxu0 %v1982
        %2191 = vmatpush1.bf16.msra.mxu0 %v1981
        %2192 = vmatprep.subr.bf16.mxu0 %v1984
        %2193 = vmatpush1.bf16.msra.mxu0 %v1983
        %2194 = vmatprep.subr.bf16.mxu0 %v1986
        %2195 = vmatpush1.bf16.msra.mxu0 %v1985
        %2196 = vmatprep.subr.bf16.mxu0 %v1988
        %2197 = vmatpush1.bf16.msra.mxu0 %v1987
        %2198 = vmatprep.subr.bf16.mxu0 %v1990
        %2199 = vmatpush1.bf16.msra.mxu0 %v1989
        %2200 = vmatprep.subr.bf16.mxu0 %v1992
        %2201 = vmatpush1.bf16.msra.mxu0 %v1991
        %2202 = vmatprep.subr.bf16.mxu0 %v1994
        %2203 = vmatpush1.bf16.msra.mxu0 %v1993
        %2204 = vmatprep.subr.bf16.mxu0 %v1996
        %2205 = vmatpush1.bf16.msra.mxu0 %v1995
        %2206 = vmatprep.subr.bf16.mxu0 %v1998
        %2207 = vmatpush1.bf16.msra.mxu0 %v1997
        %2208 = vmatprep.subr.bf16.mxu0 %v2000
        %2209 = vmatpush1.bf16.msra.mxu0 %v1999
        %2210 = vmatprep.mubr.bf16.mxu0 %v1652
        %2211 = vmatmul.mubr.bf16.gmra.mrb[0].mxu0 %v1651
        %v2212 = vpop.f32.mrb[0].mxu0
        %v2213 = vadd.f32 %v2100, %v2212
        %v2214 = vpop.f32.mrb[0].mxu0
        %v2215 = vadd.f32 %v2102, %v2214
        %v2216 = vpop.f32.mrb[0].mxu0
        %v2217 = vadd.f32 %v2104, %v2216
        %v2218 = vpop.f32.mrb[0].mxu0
        %v2219 = vadd.f32 %v2106, %v2218
        %2220 = vmatprep.mubr.bf16.mxu0 %v1656
        %2221 = vmatmul.mubr.bf16.gmra.mrb[0].mxu0 %v1655
        %v2222 = vpop.f32.mrb[0].mxu0
        %v2223 = vadd.f32 %v2110, %v2222
        %v2224 = vpop.f32.mrb[0].mxu0
        %v2225 = vadd.f32 %v2112, %v2224
        %v2226 = vpop.f32.mrb[0].mxu0
        %v2227 = vadd.f32 %v2114, %v2226
        %v2228 = vpop.f32.mrb[0].mxu0
        %v2229 = vadd.f32 %v2116, %v2228
        %2230 = vmatprep.mubr.bf16.mxu0 %v1660
        %2231 = vmatmul.mubr.bf16.gmra.mrb[0].mxu0 %v1659
        %v2232 = vpop.f32.mrb[0].mxu0
        %v2233 = vadd.f32 %v2120, %v2232
        %v2234 = vpop.f32.mrb[0].mxu0
        %v2235 = vadd.f32 %v2122, %v2234
        %v2236 = vpop.f32.mrb[0].mxu0
        %v2237 = vadd.f32 %v2124, %v2236
        %v2238 = vpop.f32.mrb[0].mxu0
        %v2239 = vadd.f32 %v2126, %v2238
        %2240 = vmatprep.mubr.bf16.mxu0 %v1664
        %2241 = vmatmul.mubr.bf16.gmra.mrb[0].mxu0 %v1663
        %v2242 = vpop.f32.mrb[0].mxu0
        %v2243 = vadd.f32 %v2130, %v2242
        %v2244 = vpop.f32.mrb[0].mxu0
        %v2245 = vadd.f32 %v2132, %v2244
        %v2246 = vpop.f32.mrb[0].mxu0
        %v2247 = vadd.f32 %v2134, %v2246
        %v2248 = vpop.f32.mrb[0].mxu0
        %v2249 = vadd.f32 %v2136, %v2248
        %2250 = vmatprep.mubr.bf16.mxu0 %v1668
        %2251 = vmatmul.mubr.bf16.gmra.mrb[0].mxu0 %v1667
        %v2252 = vpop.f32.mrb[0].mxu0
        %v2253 = vadd.f32 %v2140, %v2252
        %v2254 = vpop.f32.mrb[0].mxu0
        %v2255 = vadd.f32 %v2142, %v2254
        %v2256 = vpop.f32.mrb[0].mxu0
        %v2257 = vadd.f32 %v2144, %v2256
        %v2258 = vpop.f32.mrb[0].mxu0
        %v2259 = vadd.f32 %v2146, %v2258
        %2260 = vmatprep.mubr.bf16.mxu0 %v1672
        %2261 = vmatmul.mubr.bf16.gmra.mrb[0].mxu0 %v1671
        %v2262 = vpop.f32.mrb[0].mxu0
        %v2263 = vadd.f32 %v2150, %v2262
        %v2264 = vpop.f32.mrb[0].mxu0
        %v2265 = vadd.f32 %v2152, %v2264
        %v2266 = vpop.f32.mrb[0].mxu0
        %v2267 = vadd.f32 %v2154, %v2266
        %v2268 = vpop.f32.mrb[0].mxu0
        %v2269 = vadd.f32 %v2156, %v2268
        %2270 = vmatprep.mubr.bf16.mxu0 %v1676
        %2271 = vmatmul.mubr.bf16.gmra.mrb[0].mxu0 %v1675
        %v2272 = vpop.f32.mrb[0].mxu0
        %v2273 = vadd.f32 %v2160, %v2272
        %v2274 = vpop.f32.mrb[0].mxu0
        %v2275 = vadd.f32 %v2162, %v2274
        %v2276 = vpop.f32.mrb[0].mxu0
        %v2277 = vadd.f32 %v2164, %v2276
        %v2278 = vpop.f32.mrb[0].mxu0
        %v2279 = vadd.f32 %v2166, %v2278
        %2280 = vmatprep.mubr.bf16.mxu0 %v1680
        %2281 = vmatmul.mubr.bf16.gmra.mrb[0].mxu0 %v1679
        %v2282 = vpop.f32.mrb[0].mxu0
        %v2283 = vadd.f32 %v2170, %v2282
        %v2284 = vpop.f32.mrb[0].mxu0
        %v2285 = vadd.f32 %v2172, %v2284
        %v2286 = vpop.f32.mrb[0].mxu0
        %v2287 = vadd.f32 %v2174, %v2286
        %v2288 = vpop.f32.mrb[0].mxu0
        %v2289 = vadd.f32 %v2176, %v2288
        %2290 = vdwg.mxu0
        %v2291 = vadd.f32 %v1617, %v2213
        %v2292 = vadd.f32 %v1618, %v2215
        %v2293 = vadd.f32 %v1619, %v2217
        %v2294 = vadd.f32 %v1620, %v2219
        %v2295 = vadd.f32 %v1621, %v2223
        %v2296 = vadd.f32 %v1622, %v2225
        %v2297 = vadd.f32 %v1623, %v2227
        %v2298 = vadd.f32 %v1624, %v2229
        %v2299 = vadd.f32 %v1625, %v2233
        %v2300 = vadd.f32 %v1626, %v2235
        %v2301 = vadd.f32 %v1627, %v2237
        %v2302 = vadd.f32 %v1628, %v2239
        %v2303 = vadd.f32 %v1629, %v2243
        %v2304 = vadd.f32 %v1630, %v2245
        %v2305 = vadd.f32 %v1631, %v2247
        %v2306 = vadd.f32 %v1632, %v2249
        %v2307 = vadd.f32 %v1633, %v2253
        %v2308 = vadd.f32 %v1634, %v2255
        %v2309 = vadd.f32 %v1635, %v2257
        %v2310 = vadd.f32 %v1636, %v2259
        %v2311 = vadd.f32 %v1637, %v2263
        %v2312 = vadd.f32 %v1638, %v2265
        %v2313 = vadd.f32 %v1639, %v2267
        %v2314 = vadd.f32 %v1640, %v2269
        %v2315 = vadd.f32 %v1641, %v2273
        %v2316 = vadd.f32 %v1642, %v2275
        %v2317 = vadd.f32 %v1643, %v2277
        %v2318 = vadd.f32 %v1644, %v2279
        %v2319 = vadd.f32 %v1645, %v2283
        %v2320 = vadd.f32 %v1646, %v2285
        %v2321 = vadd.f32 %v1647, %v2287
        %v2322 = vadd.f32 %v1648, %v2289
        %2323 = vst [vmem:[%s315] sm:$0xff] %v2291
        %2324 = vst [vmem:[%s315 + $0x8] sm:$0xff] %v2292
        %2325 = vst [vmem:[%s315 + $0x10] sm:$0xff] %v2293
        %2326 = vst [vmem:[%s315 + $0x18] sm:$0xff] %v2294
        %2327 = vst [vmem:[%s315 + $0x20] sm:$0xff] %v2295
        %2328 = vst [vmem:[%s315 + $0x28] sm:$0xff] %v2296
        %2329 = vst [vmem:[%s315 + $0x30] sm:$0xff] %v2297
        %2330 = vst [vmem:[%s315 + $0x38] sm:$0xff] %v2298
        %2331 = vst [vmem:[%s315 + $0x40] sm:$0xff] %v2299
        %2332 = vst [vmem:[%s315 + $0x48] sm:$0xff] %v2300
        %2333 = vst [vmem:[%s315 + $0x50] sm:$0xff] %v2301
        %2334 = vst [vmem:[%s315 + $0x58] sm:$0xff] %v2302
        %2335 = vst [vmem:[%s315 + $0x60] sm:$0xff] %v2303
        %2336 = vst [vmem:[%s315 + $0x68] sm:$0xff] %v2304
        %2337 = vst [vmem:[%s315 + $0x70] sm:$0xff] %v2305
        %2338 = vst [vmem:[%s315 + $0x78] sm:$0xff] %v2306
        %2339 = vst [vmem:[%s315 + $0x80] sm:$0xff] %v2307
        %2340 = vst [vmem:[%s315 + $0x88] sm:$0xff] %v2308
        %2341 = vst [vmem:[%s315 + $0x90] sm:$0xff] %v2309
        %2342 = vst [vmem:[%s315 + $0x98] sm:$0xff] %v2310
        %2343 = vst [vmem:[%s315 + $0xa0] sm:$0xff] %v2311
        %2344 = vst [vmem:[%s315 + $0xa8] sm:$0xff] %v2312
        %2345 = vst [vmem:[%s315 + $0xb0] sm:$0xff] %v2313
        %2346 = vst [vmem:[%s315 + $0xb8] sm:$0xff] %v2314
        %2347 = vst [vmem:[%s315 + $0xc0] sm:$0xff] %v2315
        %2348 = vst [vmem:[%s315 + $0xc8] sm:$0xff] %v2316
        %2349 = vst [vmem:[%s315 + $0xd0] sm:$0xff] %v2317
        %2350 = vst [vmem:[%s315 + $0xd8] sm:$0xff] %v2318
        %2351 = vst [vmem:[%s315 + $0xe0] sm:$0xff] %v2319
        %2352 = vst [vmem:[%s315 + $0xe8] sm:$0xff] %v2320
        %2353 = vst [vmem:[%s315 + $0xf0] sm:$0xff] %v2321
        %2354 = vst [vmem:[%s315 + $0xf8] sm:$0xff] %v2322
        // Predicated region
        $region57: #{tpu_custom_call.1} parent=39 // pred_check
          %p2355 = pneg %p325
        $region58: #{tpu_custom_call.1} parent=39 // pred_check_branch
          %2357 = sbr.rel (%p2355) target = $region60
        $region59: #{tpu_custom_call.1} parent=39 // pred_region
          %v2358 = vld [vmem:[%s315] sm:$0xff]
          %v2359 = vld [vmem:[%s315 + $0x8] sm:$0xff]
          %v2360 = vld [vmem:[%s315 + $0x10] sm:$0xff]
          %v2361 = vld [vmem:[%s315 + $0x18] sm:$0xff]
          %v2362 = vld [vmem:[%s315 + $0x20] sm:$0xff]
          %v2363 = vld [vmem:[%s315 + $0x28] sm:$0xff]
          %v2364 = vld [vmem:[%s315 + $0x30] sm:$0xff]
          %v2365 = vld [vmem:[%s315 + $0x38] sm:$0xff]
          %v2366 = vld [vmem:[%s315 + $0x40] sm:$0xff]
          %v2367 = vld [vmem:[%s315 + $0x48] sm:$0xff]
          %v2368 = vld [vmem:[%s315 + $0x50] sm:$0xff]
          %v2369 = vld [vmem:[%s315 + $0x58] sm:$0xff]
          %v2370 = vld [vmem:[%s315 + $0x60] sm:$0xff]
          %v2371 = vld [vmem:[%s315 + $0x68] sm:$0xff]
          %v2372 = vld [vmem:[%s315 + $0x70] sm:$0xff]
          %v2373 = vld [vmem:[%s315 + $0x78] sm:$0xff]
          %v2374 = vld [vmem:[%s315 + $0x80] sm:$0xff]
          %v2375 = vld [vmem:[%s315 + $0x88] sm:$0xff]
          %v2376 = vld [vmem:[%s315 + $0x90] sm:$0xff]
          %v2377 = vld [vmem:[%s315 + $0x98] sm:$0xff]
          %v2378 = vld [vmem:[%s315 + $0xa0] sm:$0xff]
          %v2379 = vld [vmem:[%s315 + $0xa8] sm:$0xff]
          %v2380 = vld [vmem:[%s315 + $0xb0] sm:$0xff]
          %v2381 = vld [vmem:[%s315 + $0xb8] sm:$0xff]
          %v2382 = vld [vmem:[%s315 + $0xc0] sm:$0xff]
          %v2383 = vld [vmem:[%s315 + $0xc8] sm:$0xff]
          %v2384 = vld [vmem:[%s315 + $0xd0] sm:$0xff]
          %v2385 = vld [vmem:[%s315 + $0xd8] sm:$0xff]
          %v2386 = vld [vmem:[%s315 + $0xe0] sm:$0xff]
          %v2387 = vld [vmem:[%s315 + $0xe8] sm:$0xff]
          %v2388 = vld [vmem:[%s315 + $0xf0] sm:$0xff]
          %v2389 = vld [vmem:[%s315 + $0xf8] sm:$0xff]
          %v2390 = vld [vmem:[%s4] sm:$0x3]
          %v2392 = vlaneseq
          %v2393 = vshrl.u32 %v2392, 7
          %v2394 = vsub.s32 0, %v2393
          %v2395 = vrot.slane %v2390, %v2394
          %v2396 = vlaneseq
          %v2397 = vshrl.u32 %v2396, 7
          %v2398 = vsub.s32 1, %v2397
          %v2399 = vrot.slane %v2390, %v2398
          %v2402 = vadd.f32 %v2358, %v2395
          %v2403 = vadd.f32 %v2359, %v2399
          %v2404 = vadd.f32 %v2360, %v2395
          %v2405 = vadd.f32 %v2361, %v2399
          %v2406 = vadd.f32 %v2362, %v2395
          %v2407 = vadd.f32 %v2363, %v2399
          %v2408 = vadd.f32 %v2364, %v2395
          %v2409 = vadd.f32 %v2365, %v2399
          %v2410 = vadd.f32 %v2366, %v2395
          %v2411 = vadd.f32 %v2367, %v2399
          %v2412 = vadd.f32 %v2368, %v2395
          %v2413 = vadd.f32 %v2369, %v2399
          %v2414 = vadd.f32 %v2370, %v2395
          %v2415 = vadd.f32 %v2371, %v2399
          %v2416 = vadd.f32 %v2372, %v2395
          %v2417 = vadd.f32 %v2373, %v2399
          %v2418 = vadd.f32 %v2374, %v2395
          %v2419 = vadd.f32 %v2375, %v2399
          %v2420 = vadd.f32 %v2376, %v2395
          %v2421 = vadd.f32 %v2377, %v2399
          %v2422 = vadd.f32 %v2378, %v2395
          %v2423 = vadd.f32 %v2379, %v2399
          %v2424 = vadd.f32 %v2380, %v2395
          %v2425 = vadd.f32 %v2381, %v2399
          %v2426 = vadd.f32 %v2382, %v2395
          %v2427 = vadd.f32 %v2383, %v2399
          %v2428 = vadd.f32 %v2384, %v2395
          %v2429 = vadd.f32 %v2385, %v2399
          %v2430 = vadd.f32 %v2386, %v2395
          %v2431 = vadd.f32 %v2387, %v2399
          %v2432 = vadd.f32 %v2388, %v2395
          %v2433 = vadd.f32 %v2389, %v2399
          %2434 = vst [vmem:[%s315] sm:$0xff] %v2402
          %2435 = vst [vmem:[%s315 + $0x8] sm:$0xff] %v2403
          %2436 = vst [vmem:[%s315 + $0x10] sm:$0xff] %v2404
          %2437 = vst [vmem:[%s315 + $0x18] sm:$0xff] %v2405
          %2438 = vst [vmem:[%s315 + $0x20] sm:$0xff] %v2406
          %2439 = vst [vmem:[%s315 + $0x28] sm:$0xff] %v2407
          %2440 = vst [vmem:[%s315 + $0x30] sm:$0xff] %v2408
          %2441 = vst [vmem:[%s315 + $0x38] sm:$0xff] %v2409
          %2442 = vst [vmem:[%s315 + $0x40] sm:$0xff] %v2410
          %2443 = vst [vmem:[%s315 + $0x48] sm:$0xff] %v2411
          %2444 = vst [vmem:[%s315 + $0x50] sm:$0xff] %v2412
          %2445 = vst [vmem:[%s315 + $0x58] sm:$0xff] %v2413
          %2446 = vst [vmem:[%s315 + $0x60] sm:$0xff] %v2414
          %2447 = vst [vmem:[%s315 + $0x68] sm:$0xff] %v2415
          %2448 = vst [vmem:[%s315 + $0x70] sm:$0xff] %v2416
          %2449 = vst [vmem:[%s315 + $0x78] sm:$0xff] %v2417
          %2450 = vst [vmem:[%s315 + $0x80] sm:$0xff] %v2418
          %2451 = vst [vmem:[%s315 + $0x88] sm:$0xff] %v2419
          %2452 = vst [vmem:[%s315 + $0x90] sm:$0xff] %v2420
          %2453 = vst [vmem:[%s315 + $0x98] sm:$0xff] %v2421
          %2454 = vst [vmem:[%s315 + $0xa0] sm:$0xff] %v2422
          %2455 = vst [vmem:[%s315 + $0xa8] sm:$0xff] %v2423
          %2456 = vst [vmem:[%s315 + $0xb0] sm:$0xff] %v2424
          %2457 = vst [vmem:[%s315 + $0xb8] sm:$0xff] %v2425
          %2458 = vst [vmem:[%s315 + $0xc0] sm:$0xff] %v2426
          %2459 = vst [vmem:[%s315 + $0xc8] sm:$0xff] %v2427
          %2460 = vst [vmem:[%s315 + $0xd0] sm:$0xff] %v2428
          %2461 = vst [vmem:[%s315 + $0xd8] sm:$0xff] %v2429
          %2462 = vst [vmem:[%s315 + $0xe0] sm:$0xff] %v2430
          %2463 = vst [vmem:[%s315 + $0xe8] sm:$0xff] %v2431
          %2464 = vst [vmem:[%s315 + $0xf0] sm:$0xff] %v2432
          %2465 = vst [vmem:[%s315 + $0xf8] sm:$0xff] %v2433
        $region60: #{tpu_custom_call.1} parent=39 // pred_fallthru
          _
        %s2466 = sand.u32 %s168, 1
        %s2467 = scalar_lea.sflag [#allocation4], %s2466
        %s2468 = sand.u32 %s168, 1
        %s2469 = smul.addr %s2468, 256
        %s2470 = scalar_lea.vmem [#allocation8], %s2469
        // Predicated region
        $region61: #{tpu_custom_call.1} parent=39 // pred_check
          %p2471 = pneg %p178
        $region62: #{tpu_custom_call.1} parent=39 // pred_check_branch
          %2473 = sbr.rel (%p2471) target = $region64
        $region63: #{tpu_custom_call.1} parent=39 // pred_region
          %s2474 = smul.u32 16, %s27
          %s2476 = ssub.s32 4096, 4096
          %2477 = vsyncadd %s2467, %s2476
          %s2478 = smul.addr %s2474, 2
          %s2479 = smul.addr %s2478, 128
          %s2480 = scalar_lea.hbm %s5, %s2479
          %s2481 = sshll.u32 %s2470, 4
          %s2482 = int_to_ptr.vmem [resolvable:$true] %s2481
          %2487 = dma.vmem_to_hbm [thread:$0]  %s2482, 4096, %s2480, %s2467, 256, 256, 16
        $region64: #{tpu_custom_call.1} parent=39 // pred_fallthru
          _
      $region40: #{tpu_custom_call.1} parent=5 // pred_fallthru
        _
      %p2488 = scmp.le.s32.totalorder 2, %s18
      // Predicated region
      $region65: #{tpu_custom_call.1} parent=5 // pred_check
        %p2489 = pneg %p2488
      $region66: #{tpu_custom_call.1} parent=5 // pred_check_branch
        %2491 = sbr.rel (%p2489) target = $region68
      $region67: #{tpu_custom_call.1} parent=5 // pred_region
        %s2492 = ssub.s32 %s18, 2
        // Predicated region
        $region69: #{tpu_custom_call.1} parent=67 // pred_check
          %p2493 = pneg %p184
        $region70: #{tpu_custom_call.1} parent=67 // pred_check_branch
          %2495 = sbr.rel (%p2493) target = $region72
        $region71: #{tpu_custom_call.1} parent=67 // pred_region
          %s2496 = sand.u32 %s169, 1
          %s2497 = scalar_lea.sflag [#allocation4], %s2496
          %s2498 = sand.u32 %s169, 1
          %s2499 = smul.addr %s2498, 256
          %s2500 = scalar_lea.vmem [#allocation8], %s2499
          %2501 = dma.done %s2497, 4096
        $region72: #{tpu_custom_call.1} parent=67 // pred_fallthru
          _
      $region68: #{tpu_custom_call.1} parent=5 // pred_fallthru
        _
    $region6: #{tpu_custom_call.1} parent=1 // loop_footer
      %s22 = sadd.s32 1, %s18
    $region7: #{tpu_custom_call.1} parent=1 // loop_footer_branch
      %17 = sbr.rel target = $region3
    $region8: #{tpu_custom_call.1} parent=1 // loop_exit
      _
    %2502 = vsyncpa [#allocation3], 1
    %s2503 = scalar_lea.sflag [#allocation3], 1
    %2504 = vsyncpa %s2503, 1
    %2505 = vsyncpa [#allocation6], 1
    %2506 = vsyncpa [#allocation4], 1
    %s2507 = scalar_lea.sflag [#allocation4], 1
    %2508 = vsyncpa %s2507, 1

</llo_original>
